<compile_context>
chip_gen: v7x
topology: tpu7x:2x2x1
jax: 0.10.0
libtpu: 0.0.40
codegen_flags: <defaults>
</compile_context>

<pallas_src>
import jax
import jax.numpy as jnp
from jax.experimental import pallas as pl
from jax.experimental.pallas import tpu as pltpu

_LANE = 128


def _round_up(x, m):
    return (x + m - 1) // m * m


def _pad2(a, shape, dtype=None):
    out = jnp.pad(a, [(0, s - d) for s, d in zip(shape, a.shape)])
    return out.astype(dtype) if dtype is not None else out


def _device_tiling():
    """(tm, tk, vmem_limit_bytes) chosen per TPU generation."""
    vmem_phys = 64 * 1024 * 1024  # conservative default (v7x per-TC)
    try:
        info = pltpu.get_tpu_info()
        vmem_phys = int(getattr(info, "vmem_capacity_bytes", vmem_phys))
    except Exception:
        pass
    if vmem_phys >= 96 * 1024 * 1024:
        # v5e / v6e: 128 MiB VMEM, lowest HBM BW -> deep row stripes.
        return 512, 512, 96 * 1024 * 1024
    # v7x: 64 MiB per TensorCore -> tighter cap with headroom for scratch.
    return 256, 512, 40 * 1024 * 1024


# ----------------------------------------------------------------------------
# Kernels.  Grid = (row tile i, reduction tile k); f32 scratch accumulates
# A_tile @ Z_tile over k, epilogue runs at the last k step.
# ----------------------------------------------------------------------------
def _layer1_fused_kernel(a_ref, x_ref, w1_ref, b1_ref, w2_ref, o_ref, acc_ref):
    # acc (f32) accumulates AX; at k==last: o = relu(acc @ W1 + b1) @ W2.
    @pl.when(pl.program_id(1) == 0)
    def _():
        acc_ref[...] = jnp.zeros_like(acc_ref)

    acc_ref[...] += jnp.dot(
        a_ref[...], x_ref[...], preferred_element_type=jnp.float32
    )

    @pl.when(pl.program_id(1) == pl.num_programs(1) - 1)
    def _():
        # AX stays f32 in-register through the first transform (no bf16
        # rounding of the intermediate); the second matmul feeds the MXU bf16.
        t = jnp.dot(
            acc_ref[...],
            w1_ref[...].astype(jnp.float32),
            preferred_element_type=jnp.float32,
        )
        t = jnp.maximum(t + b1_ref[...], 0.0)
        o_ref[...] = jnp.dot(
            t.astype(jnp.bfloat16), w2_ref[...], preferred_element_type=jnp.float32
        ).astype(o_ref.dtype)


def _layer2_agg_kernel(a_ref, z_ref, b2_ref, o_ref, acc_ref):
    # out_tile = A_tile @ HW + b2   (bf16 streams, f32 accumulation over k)
    @pl.when(pl.program_id(1) == 0)
    def _():
        acc_ref[...] = jnp.zeros_like(acc_ref)

    acc_ref[...] += jnp.dot(
        a_ref[...], z_ref[...], preferred_element_type=jnp.float32
    )

    @pl.when(pl.program_id(1) == pl.num_programs(1) - 1)
    def _():
        o_ref[...] = (acc_ref[...] + b2_ref[...]).astype(o_ref.dtype)


def _row_k_tiled(kernel, a, z, consts, out_cols, out_dtype, acc_cols,
                 tm, tk, vmem_bytes):
    """Runs `kernel` over (row, k) tiles of A; `z` streams along k;
    `consts` are full-block residents (constant index_map)."""
    n_p = a.shape[0]
    tm = max(8, min(tm, n_p // 2))  # >=2 row steps -> both v7x TCs busy
    tk = min(tk, n_p)               # n_p is a multiple of 128, so tk % 128 == 0
    grid = (pl.cdiv(n_p, tm), pl.cdiv(n_p, tk))

    z_cols = z.shape[1]
    in_specs = [
        pl.BlockSpec((tm, tk), lambda i, k: (i, k)),
        pl.BlockSpec((tk, z_cols), lambda i, k: (k, 0)),
    ]
    for c in consts:
        in_specs.append(pl.BlockSpec(c.shape, lambda i, k: (0, 0)))

    return pl.pallas_call(
        kernel,
        out_shape=jax.ShapeDtypeStruct((n_p, out_cols), out_dtype),
        grid_spec=pltpu.PrefetchScalarGridSpec(
            num_scalar_prefetch=0,
            grid=grid,
            in_specs=in_specs,
            out_specs=pl.BlockSpec((tm, out_cols), lambda i, k: (i, 0)),
            scratch_shapes=[pltpu.VMEM((tm, acc_cols), jnp.float32)],
        ),
        compiler_params=pltpu.CompilerParams(
            dimension_semantics=("parallel", "arbitrary"),
            vmem_limit_bytes=vmem_bytes,
        ),
    )(a, z, *consts)


# ----------------------------------------------------------------------------
# Full forward pass.
# ----------------------------------------------------------------------------
def gnn_forward(a_bf, x, w1, b1, w2, b2):
    """a_bf: [Np, Np] bf16 padded normalized adjacency (from prepare_adjacency),
    x: [N, Cin] f32, w1: [Cin, H], b1: [1, H], w2: [H, Cout], b2: [1, Cout]
    -> [N, Cout] f32."""
    n, cin = x.shape
    hid = w1.shape[1]
    cout = w2.shape[1]
    n_p = a_bf.shape[0]
    assert a_bf.shape == (n_p, n_p) and n_p >= n and n_p % _LANE == 0

    cin_p = _round_up(cin, _LANE)
    hid_p = _round_up(hid, _LANE)
    cout_p = _round_up(cout, _LANE)

    # Zero-padding keeps the math exact for the valid region: padded X rows
    # and padded A columns are zero, so junk in padded HW rows (from relu(b1))
    # never reaches valid output rows; the final [:n, :cout] slice drops them.
    x_bf = _pad2(x, (n_p, cin_p), jnp.bfloat16)
    w1_bf = _pad2(w1, (cin_p, hid_p), jnp.bfloat16)
    b1_p = _pad2(b1, (1, hid_p), jnp.float32)
    w2_bf = _pad2(w2, (hid_p, cout_p), jnp.bfloat16)
    b2_p = _pad2(b2, (1, cout_p), jnp.float32)

    tm, tk, vmem_bytes = _device_tiling()

    # Fused layer 1: HW = relu((A @ X) @ W1 + b1) @ W2   (single pass over A).
    hw = _row_k_tiled(
        _layer1_fused_kernel, a_bf, x_bf, (w1_bf, b1_p, w2_bf),
        out_cols=cout_p, out_dtype=jnp.bfloat16, acc_cols=cin_p,
        tm=tm, tk=tk, vmem_bytes=vmem_bytes,
    )

    # Layer 2 aggregation: out = A @ HW + b2.
    out = _row_k_tiled(
        _layer2_agg_kernel, a_bf, hw, (b2_p,),
        out_cols=cout_p, out_dtype=jnp.float32, acc_cols=cout_p,
        tm=tm, tk=tk, vmem_bytes=vmem_bytes,
    )

    return out[:n, :cout]


gnn_forward_jit = jax.jit(gnn_forward)


# ----------------------------------------------------------------------------
# Glue: dense normalized adjacency from edge_index (PyG gcn_norm semantics),
# padded + bf16-cast ONCE per graph (hoisted out of the per-call forward).
# ----------------------------------------------------------------------------
def build_normalized_adjacency(edge_index, num_nodes):
    """edge_index: int32 [2, E] rows (source, target).

    A_hat[target, source] accumulates edge multiplicity (scatter-ADD, like
    PyG's scatter-based gcn_norm); weight-1 self loops added only for nodes
    lacking one (add_remaining_self_loops).  Returns D^-1/2 A_hat D^-1/2.
    """
    src, dst = edge_index[0], edge_index[1]
    a_hat = jnp.zeros((num_nodes, num_nodes), jnp.float32)
    a_hat = a_hat.at[dst, src].add(1.0)
    diag = jnp.diagonal(a_hat)
    a_hat = a_hat + jnp.diag(jnp.where(diag == 0.0, 1.0, 0.0))
    deg = jnp.sum(a_hat, axis=1)
    d_inv_sqrt = jnp.where(deg > 0, jax.lax.rsqrt(deg), 0.0)
    return d_inv_sqrt[:, None] * a_hat * d_inv_sqrt[None, :]


def prepare_adjacency(a_norm):
    """Pad to a 128-multiple and cast to bf16 once per graph."""
    n = a_norm.shape[0]
    n_p = _round_up(n, _LANE)
    return _pad2(a_norm, (n_p, n_p), jnp.bfloat16)


# ----------------------------------------------------------------------------
# Deterministic parameter init (Glorot-uniform, like PyG GCNConv).
# ----------------------------------------------------------------------------
def init_params(key, in_channels, hidden_channels, out_channels):
    k1, k2 = jax.random.split(key)

    def glorot(k, fan_in, fan_out):
        limit = jnp.sqrt(6.0 / (fan_in + fan_out))
        return jax.random.uniform(
            k, (fan_in, fan_out), jnp.float32, minval=-limit, maxval=limit
        )

    w1 = glorot(k1, in_channels, hidden_channels)
    b1 = jnp.zeros((1, hidden_channels), jnp.float32)
    w2 = glorot(k2, hidden_channels, out_channels)
    b2 = jnp.zeros((1, out_channels), jnp.float32)
    return w1, b1, w2, b2


if __name__ == "__main__":
    # Small synthetic graph consistent with GNNModel(in, hidden, out).
    num_nodes = 16
    in_channels = 8
    hidden_channels = 32
    out_channels = 16
    num_edges = 40

    key = jax.random.PRNGKey(0)
    kx, ke1, ke2, kp = jax.random.split(key, 4)

    x = jax.random.normal(kx, (num_nodes, in_channels), jnp.float32)
    edge_src = jax.random.randint(ke1, (num_edges,), 0, num_nodes, jnp.int32)
    edge_dst = jax.random.randint(ke2, (num_edges,), 0, num_nodes, jnp.int32)
    edge_index = jnp.stack([edge_src, edge_dst], axis=0)  # [2, E]

    w1, b1, w2, b2 = init_params(kp, in_channels, hidden_channels, out_channels)
    a_norm = build_normalized_adjacency(edge_index, num_nodes)
    a_bf = prepare_adjacency(a_norm)  # hoisted: once per graph, not per forward

    out = gnn_forward_jit(a_bf, x, w1, b1, w2, b2)
    out = jax.block_until_ready(out)

    # Pure-JAX f32 reference of the same math (kernel uses bf16 MXU streams
    # with f32 accumulation, so tolerance is loosened accordingly).
    ref_h = jnp.maximum(a_norm @ (x @ w1) + b1, 0.0)
    ref = a_norm @ (ref_h @ w2) + b2
    assert out.shape == (num_nodes, out_channels)
    assert jnp.allclose(out, ref, atol=5e-2, rtol=5e-2), (
        float(jnp.max(jnp.abs(out - ref)))
    )

    print("KERNEL_OK")
</pallas_src>

<mosaic_0001>
module attributes {stable_mosaic.version = 11 : i64} {
  func.func @_layer2_agg_kernel(%arg0: i32, %arg1: i32, %arg2: memref<64x128xbf16, #tpu.memory_space<vmem>>, %arg3: memref<128x128xbf16, #tpu.memory_space<vmem>>, %arg4: memref<1x128xf32, #tpu.memory_space<vmem>>, %arg5: memref<64x128xf32, #tpu.memory_space<vmem>>, %arg6: memref<64x128xf32, #tpu.memory_space<vmem>>) attributes {dimension_semantics = [#tpu.dimension_semantics<parallel>, #tpu.dimension_semantics<arbitrary>], iteration_bounds = array<i64: 2, 1>, scalar_prefetch = 0 : i64, scratch_operands = 1 : i64, tpu.core_type = #tpu.core_type<tc>, window_params = [{transform_indices = @transform_0, window_bounds = array<i64: 64, 128>}, {transform_indices = @transform_1, window_bounds = array<i64: 128, 128>}, {pipeline_mode = #tpu.pipeline_mode<synchronous>, transform_indices = @transform_2, window_bounds = array<i64: 1, 128>}, {transform_indices = @transform_3, window_bounds = array<i64: 64, 128>}]} {
    %c0_i32 = arith.constant 0 : i32
    %0 = arith.cmpi eq, %arg1, %c0_i32 : i32
    %1 = arith.extui %0 : i1 to i32
    %c0_i32_0 = arith.constant 0 : i32
    %2 = arith.cmpi ne, %1, %c0_i32_0 : i32
    scf.if %2 {
      %cst_10 = arith.constant 0.000000e+00 : f32
      %12 = vector.broadcast %cst_10 : f32 to vector<64x128xf32>
      %c0_11 = arith.constant 0 : index
      %c0_12 = arith.constant 0 : index
      %13 = vector.load %arg6[%c0_11, %c0_12] : memref<64x128xf32, #tpu.memory_space<vmem>>, vector<64x128xf32>
      tpu.vector_store %arg6[%c0_11, %c0_12], %12 {strides = array<i32>} : memref<64x128xf32, #tpu.memory_space<vmem>>, vector<64x128xf32>,
    } else {
    }
    %c0 = arith.constant 0 : index
    %c0_1 = arith.constant 0 : index
    %3 = vector.load %arg6[%c0, %c0_1] : memref<64x128xf32, #tpu.memory_space<vmem>>, vector<64x128xf32>
    %c0_2 = arith.constant 0 : index
    %c0_3 = arith.constant 0 : index
    %4 = vector.load %arg2[%c0_2, %c0_3] : memref<64x128xbf16, #tpu.memory_space<vmem>>, vector<64x128xbf16>
    %c0_4 = arith.constant 0 : index
    %c0_5 = arith.constant 0 : index
    %5 = vector.load %arg3[%c0_4, %c0_5] : memref<128x128xbf16, #tpu.memory_space<vmem>>, vector<128x128xbf16>
    %cst = arith.constant dense<0.000000e+00> : vector<64x128xf32>
    %6 = tpu.matmul %4, %5, %cst {dimension_numbers = #tpu.dot_dimension_numbers<[1], [0], [0], [1], [0, 0, 1, 1], [], []>} : vector<64x128xbf16>, vector<128x128xbf16>, vector<64x128xf32> -> vector<64x128xf32>
    %7 = arith.addf %3, %6 : vector<64x128xf32>
    %c0_6 = arith.constant 0 : index
    %c0_7 = arith.constant 0 : index
    %8 = vector.load %arg6[%c0_6, %c0_7] : memref<64x128xf32, #tpu.memory_space<vmem>>, vector<64x128xf32>
    tpu.vector_store %arg6[%c0_6, %c0_7], %7 {strides = array<i32>} : memref<64x128xf32, #tpu.memory_space<vmem>>, vector<64x128xf32>,
    %c0_i32_8 = arith.constant 0 : i32
    %9 = arith.cmpi eq, %arg1, %c0_i32_8 : i32
    %10 = arith.extui %9 : i1 to i32
    %c0_i32_9 = arith.constant 0 : i32
    %11 = arith.cmpi ne, %10, %c0_i32_9 : i32
    scf.if %11 {
      %c0_10 = arith.constant 0 : index
      %c0_11 = arith.constant 0 : index
      %12 = vector.load %arg6[%c0_10, %c0_11] : memref<64x128xf32, #tpu.memory_space<vmem>>, vector<64x128xf32>
      %c0_12 = arith.constant 0 : index
      %c0_13 = arith.constant 0 : index
      %13 = vector.load %arg4[%c0_12, %c0_13] : memref<1x128xf32, #tpu.memory_space<vmem>>, vector<1x128xf32>
      %14 = vector.broadcast %13 : vector<1x128xf32> to vector<64x128xf32>
      %15 = arith.addf %12, %14 : vector<64x128xf32>
      %c0_14 = arith.constant 0 : index
      %c0_15 = arith.constant 0 : index
      %16 = vector.load %arg5[%c0_14, %c0_15] : memref<64x128xf32, #tpu.memory_space<vmem>>, vector<64x128xf32>
      tpu.vector_store %arg5[%c0_14, %c0_15], %15 {strides = array<i32>} : memref<64x128xf32, #tpu.memory_space<vmem>>, vector<64x128xf32>,
    } else {
    }
    return
  }
  func.func @transform_0(%arg0: i32, %arg1: i32) -> (i32, i32) {
    %c0_i32 = arith.constant 0 : i32
    return %arg0, %arg1 : i32, i32
  }
  func.func @transform_1(%arg0: i32, %arg1: i32) -> (i32, i32) {
    %c0_i32 = arith.constant 0 : i32
    %c0_i32_0 = arith.constant 0 : i32
    return %arg1, %c0_i32 : i32, i32
  }
  func.func @transform_2(%arg0: i32, %arg1: i32) -> (i32, i32) {
    %c0_i32 = arith.constant 0 : i32
    %c0_i32_0 = arith.constant 0 : i32
    %c0_i32_1 = arith.constant 0 : i32
    return %c0_i32, %c0_i32_0 : i32, i32
  }
  func.func @transform_3(%arg0: i32, %arg1: i32) -> (i32, i32) {
    %c0_i32 = arith.constant 0 : i32
    %c0_i32_0 = arith.constant 0 : i32
    return %arg0, %c0_i32 : i32, i32
  }
}

module attributes {stable_mosaic.version = 11 : i64} {
  func.func @_layer1_fused_kernel(%arg0: i32, %arg1: i32, %arg2: memref<64x128xbf16, #tpu.memory_space<vmem>>, %arg3: memref<128x128xbf16, #tpu.memory_space<vmem>>, %arg4: memref<128x128xbf16, #tpu.memory_space<vmem>>, %arg5: memref<1x128xf32, #tpu.memory_space<vmem>>, %arg6: memref<128x128xbf16, #tpu.memory_space<vmem>>, %arg7: memref<64x128xbf16, #tpu.memory_space<vmem>>, %arg8: memref<64x128xf32, #tpu.memory_space<vmem>>) attributes {dimension_semantics = [#tpu.dimension_semantics<parallel>, #tpu.dimension_semantics<arbitrary>], iteration_bounds = array<i64: 2, 1>, scalar_prefetch = 0 : i64, scratch_operands = 1 : i64, tpu.core_type = #tpu.core_type<tc>, window_params = [{transform_indices = @transform_0, window_bounds = array<i64: 64, 128>}, {transform_indices = @transform_1, window_bounds = array<i64: 128, 128>}, {pipeline_mode = #tpu.pipeline_mode<synchronous>, transform_indices = @transform_2, window_bounds = array<i64: 128, 128>}, {pipeline_mode = #tpu.pipeline_mode<synchronous>, transform_indices = @transform_3, window_bounds = array<i64: 1, 128>}, {pipeline_mode = #tpu.pipeline_mode<synchronous>, transform_indices = @transform_4, window_bounds = array<i64: 128, 128>}, {transform_indices = @transform_5, window_bounds = array<i64: 64, 128>}]} {
    %c0_i32 = arith.constant 0 : i32
    %0 = arith.cmpi eq, %arg1, %c0_i32 : i32
    %1 = arith.extui %0 : i1 to i32
    %c0_i32_0 = arith.constant 0 : i32
    %2 = arith.cmpi ne, %1, %c0_i32_0 : i32
    scf.if %2 {
      %cst_10 = arith.constant 0.000000e+00 : f32
      %12 = vector.broadcast %cst_10 : f32 to vector<64x128xf32>
      %c0_11 = arith.constant 0 : index
      %c0_12 = arith.constant 0 : index
      %13 = vector.load %arg8[%c0_11, %c0_12] : memref<64x128xf32, #tpu.memory_space<vmem>>, vector<64x128xf32>
      tpu.vector_store %arg8[%c0_11, %c0_12], %12 {strides = array<i32>} : memref<64x128xf32, #tpu.memory_space<vmem>>, vector<64x128xf32>,
    } else {
    }
    %c0 = arith.constant 0 : index
    %c0_1 = arith.constant 0 : index
    %3 = vector.load %arg8[%c0, %c0_1] : memref<64x128xf32, #tpu.memory_space<vmem>>, vector<64x128xf32>
    %c0_2 = arith.constant 0 : index
    %c0_3 = arith.constant 0 : index
    %4 = vector.load %arg2[%c0_2, %c0_3] : memref<64x128xbf16, #tpu.memory_space<vmem>>, vector<64x128xbf16>
    %c0_4 = arith.constant 0 : index
    %c0_5 = arith.constant 0 : index
    %5 = vector.load %arg3[%c0_4, %c0_5] : memref<128x128xbf16, #tpu.memory_space<vmem>>, vector<128x128xbf16>
    %cst = arith.constant dense<0.000000e+00> : vector<64x128xf32>
    %6 = tpu.matmul %4, %5, %cst {dimension_numbers = #tpu.dot_dimension_numbers<[1], [0], [0], [1], [0, 0, 1, 1], [], []>} : vector<64x128xbf16>, vector<128x128xbf16>, vector<64x128xf32> -> vector<64x128xf32>
    %7 = arith.addf %3, %6 : vector<64x128xf32>
    %c0_6 = arith.constant 0 : index
    %c0_7 = arith.constant 0 : index
    %8 = vector.load %arg8[%c0_6, %c0_7] : memref<64x128xf32, #tpu.memory_space<vmem>>, vector<64x128xf32>
    tpu.vector_store %arg8[%c0_6, %c0_7], %7 {strides = array<i32>} : memref<64x128xf32, #tpu.memory_space<vmem>>, vector<64x128xf32>,
    %c0_i32_8 = arith.constant 0 : i32
    %9 = arith.cmpi eq, %arg1, %c0_i32_8 : i32
    %10 = arith.extui %9 : i1 to i32
    %c0_i32_9 = arith.constant 0 : i32
    %11 = arith.cmpi ne, %10, %c0_i32_9 : i32
    scf.if %11 {
      %c0_10 = arith.constant 0 : index
      %c0_11 = arith.constant 0 : index
      %12 = vector.load %arg8[%c0_10, %c0_11] : memref<64x128xf32, #tpu.memory_space<vmem>>, vector<64x128xf32>
      %c0_12 = arith.constant 0 : index
      %c0_13 = arith.constant 0 : index
      %13 = vector.load %arg4[%c0_12, %c0_13] : memref<128x128xbf16, #tpu.memory_space<vmem>>, vector<128x128xbf16>
      %14 = arith.extf %13 : vector<128x128xbf16> to vector<128x128xf32>
      %cst_14 = arith.constant dense<0.000000e+00> : vector<64x128xf32>
      %15 = tpu.matmul %12, %14, %cst_14 {dimension_numbers = #tpu.dot_dimension_numbers<[1], [0], [0], [1], [0, 0, 1, 1], [], []>} : vector<64x128xf32>, vector<128x128xf32>, vector<64x128xf32> -> vector<64x128xf32>
      %c0_15 = arith.constant 0 : index
      %c0_16 = arith.constant 0 : index
      %16 = vector.load %arg5[%c0_15, %c0_16] : memref<1x128xf32, #tpu.memory_space<vmem>>, vector<1x128xf32>
      %17 = vector.broadcast %16 : vector<1x128xf32> to vector<64x128xf32>
      %18 = arith.addf %15, %17 : vector<64x128xf32>
      %cst_17 = arith.constant 0.000000e+00 : f32
      %19 = vector.broadcast %cst_17 : f32 to vector<64x128xf32>
      %20 = arith.maximumf %18, %19 : vector<64x128xf32>
      %21 = arith.truncf %20 : vector<64x128xf32> to vector<64x128xbf16>
      %c0_18 = arith.constant 0 : index
      %c0_19 = arith.constant 0 : index
      %22 = vector.load %arg6[%c0_18, %c0_19] : memref<128x128xbf16, #tpu.memory_space<vmem>>, vector<128x128xbf16>
      %cst_20 = arith.constant dense<0.000000e+00> : vector<64x128xf32>
      %23 = tpu.matmul %21, %22, %cst_20 {dimension_numbers = #tpu.dot_dimension_numbers<[1], [0], [0], [1], [0, 0, 1, 1], [], []>} : vector<64x128xbf16>, vector<128x128xbf16>, vector<64x128xf32> -> vector<64x128xf32>
      %24 = arith.truncf %23 : vector<64x128xf32> to vector<64x128xbf16>
      %c0_21 = arith.constant 0 : index
      %c0_22 = arith.constant 0 : index
      %25 = vector.load %arg7[%c0_21, %c0_22] : memref<64x128xbf16, #tpu.memory_space<vmem>>, vector<64x128xbf16>
      tpu.vector_store %arg7[%c0_21, %c0_22], %24 {strides = array<i32>} : memref<64x128xbf16, #tpu.memory_space<vmem>>, vector<64x128xbf16>,
    } else {
    }
    return
  }
  func.func @transform_0(%arg0: i32, %arg1: i32) -> (i32, i32) {
    %c0_i32 = arith.constant 0 : i32
    return %arg0, %arg1 : i32, i32
  }
  func.func @transform_1(%arg0: i32, %arg1: i32) -> (i32, i32) {
    %c0_i32 = arith.constant 0 : i32
    %c0_i32_0 = arith.constant 0 : i32
    return %arg1, %c0_i32 : i32, i32
  }
  func.func @transform_2(%arg0: i32, %arg1: i32) -> (i32, i32) {
    %c0_i32 = arith.constant 0 : i32
    %c0_i32_0 = arith.constant 0 : i32
    %c0_i32_1 = arith.constant 0 : i32
    return %c0_i32, %c0_i32_0 : i32, i32
  }
  func.func @transform_3(%arg0: i32, %arg1: i32) -> (i32, i32) {
    %c0_i32 = arith.constant 0 : i32
    %c0_i32_0 = arith.constant 0 : i32
    %c0_i32_1 = arith.constant 0 : i32
    return %c0_i32, %c0_i32_0 : i32, i32
  }
  func.func @transform_4(%arg0: i32, %arg1: i32) -> (i32, i32) {
    %c0_i32 = arith.constant 0 : i32
    %c0_i32_0 = arith.constant 0 : i32
    %c0_i32_1 = arith.constant 0 : i32
    return %c0_i32, %c0_i32_0 : i32, i32
  }
  func.func @transform_5(%arg0: i32, %arg1: i32) -> (i32, i32) {
    %c0_i32 = arith.constant 0 : i32
    %c0_i32_0 = arith.constant 0 : i32
    return %arg0, %c0_i32 : i32, i32
  }
}

</mosaic_0001>

<llo_original>
// kernel: gnn_forward.3
$region0: #{gnn_forward.3}
  #allocation0 [shape = 'u32[]', space=smem, size = 0x4, offset = 0x4, fixed_abs, tag = 'smem constant byte address 0x4 - core index']
  #allocation1 [shape = 'u32[144,128]{1,0:T(1,128)}', space=vmem, size = 0x12000, scoped, tag = 'internal scratch']
  #allocation2 [shape = 'f32[64,128]{1,0:T(8,128)}', space=vmem, size = 0x8000, scoped, tag = 'scratch operand']
  %s0 = inlined_call_operand.vmem [shape: bf16[128,128], index: 0, kind: input, shape index: {}]
  %s1 = inlined_call_operand.vmem [shape: bf16[128,128], index: 1, kind: input, shape index: {}]
  %s2 = inlined_call_operand.vmem [shape: f32[1,128], index: 2, kind: input, shape index: {}]
  %s3 = inlined_call_operand.vmem [shape: f32[128,128], index: 3, kind: output, shape index: {}]
  %s4 = sld [smem:[#allocation0]]
  $region53: #{gnn_forward.3} parent=0
    _
  %s6 = ssub.s32 1, %s4
  %s7 = scalar_select 0, %s6, %s4
  loop: start=0, step=1, limit=4
  $region2: #{gnn_forward.3} parent=0 // loop_pre_header
    _
  $region3: #{gnn_forward.3} parent=0 // loop_header
    %s9 = sphi 0, %s13
    %p10 = scmp.ge.s32.totalorder %s9, 4
    %s16 = sphi 0, %s28
    %s17 = sphi 0, %s24
    %s18 = sphi 0, %s16
    %s19 = sphi 0, %s17
    %s20 = sphi 0, %s18
    %s21 = sphi 0, %s19
    %s33 = sphi 0, %s35
    %s36 = sphi 0, %s33
    %s37 = sphi 0, %s36
    %s53 = sphi 0, %s37
    %s59 = sphi 0, %s61
    %s62 = sphi 0, %s59
    %s63 = sphi 0, %s62
    %s79 = sphi 0, %s63
    %s83 = sphi 0, %s83
    %s85 = sphi 0, %s83
    %s86 = sphi 0, %s85
    %s100 = sphi 0, %s86
    %s106 = sphi 0, %s108
    %s109 = sphi 0, %s106
    %s110 = sphi 0, %s109
    %s126 = sphi 0, %s110
  $region4: #{gnn_forward.3} parent=0 // loop_header_branch
    %12 = sbr.rel (%p10) target = $region8
  $region5: #{gnn_forward.3} parent=0 // loop_body
    %s14 = ssub.s32 %s9, 1
    %s15 = ssub.s32 %s9, 2
    %s22 = sadd.s32 1, %s17
    %p23 = scmp.ge.s32.totalorder %s22, 1
    %s24 = scalar_select %p23, 0, %s22
    %s25 = sadd.s32 1, %s16
    %s26 = scalar_select %p23, %s25, %s16
    %p27 = scmp.ge.s32.totalorder %s26, 2
    %s28 = scalar_select %p27, 0, %s26
    %s29 = ssub.s32 %s16, %s28
    %s30 = ssub.s32 %s17, %s24
    %s31 = sor.u32 %s29, %s30
    %p32 = scmp.eq.s32.totalorder %s31, 0
    %s34 = sadd.s32 %s33, 1
    %s35 = scalar_select %p32, %s33, %s34
    %p38 = pneg %p32
    %p39 = scmp.eq.s32.totalorder %s9, 1
    %p40 = por %p38, %p39
    %p41 = scmp.ne.s32.totalorder %s33, %s36
    %p42 = scmp.eq.s32.totalorder %s9, 0
    %p43 = por %p41, %p42
    %p44 = scmp.ne.s32.totalorder %s33, %s36
    %p45 = scmp.eq.s32.totalorder %s14, 1
    %p46 = por %p44, %p45
    %p47 = scmp.ne.s32.totalorder %s36, %s37
    %p48 = scmp.eq.s32.totalorder %s14, 0
    %p49 = por %p47, %p48
    %p50 = scmp.ne.s32.totalorder %s36, %s37
    %p51 = scmp.eq.s32.totalorder %s15, 1
    %p52 = por %p50, %p51
    %p54 = scmp.ne.s32.totalorder %s37, %s53
    %p55 = scmp.eq.s32.totalorder %s15, 0
    %p56 = por %p54, %p55
    %s57 = ssub.s32 %s17, %s24
    %p58 = scmp.eq.s32.totalorder %s57, 0
    %s60 = sadd.s32 %s59, 1
    %s61 = scalar_select %p58, %s59, %s60
    %p64 = pneg %p58
    %p65 = scmp.eq.s32.totalorder %s9, 1
    %p66 = por %p64, %p65
    %p67 = scmp.ne.s32.totalorder %s59, %s62
    %p68 = scmp.eq.s32.totalorder %s9, 0
    %p69 = por %p67, %p68
    %p70 = scmp.ne.s32.totalorder %s59, %s62
    %p71 = scmp.eq.s32.totalorder %s14, 1
    %p72 = por %p70, %p71
    %p73 = scmp.ne.s32.totalorder %s62, %s63
    %p74 = scmp.eq.s32.totalorder %s14, 0
    %p75 = por %p73, %p74
    %p76 = scmp.ne.s32.totalorder %s62, %s63
    %p77 = scmp.eq.s32.totalorder %s15, 1
    %p78 = por %p76, %p77
    %p80 = scmp.ne.s32.totalorder %s63, %s79
    %p81 = scmp.eq.s32.totalorder %s15, 0
    %p82 = por %p80, %p81
    %s84 = sadd.s32 %s83, 1
    %p87 = scmp.eq.s32.totalorder %s9, 1
    %p88 = scmp.ne.s32.totalorder %s83, %s85
    %p89 = scmp.eq.s32.totalorder %s9, 0
    %p90 = por %p88, %p89
    %p91 = scmp.ne.s32.totalorder %s83, %s85
    %p92 = scmp.eq.s32.totalorder %s14, 1
    %p93 = por %p91, %p92
    %p94 = scmp.ne.s32.totalorder %s85, %s86
    %p95 = scmp.eq.s32.totalorder %s14, 0
    %p96 = por %p94, %p95
    %p97 = scmp.ne.s32.totalorder %s85, %s86
    %p98 = scmp.eq.s32.totalorder %s15, 1
    %p99 = por %p97, %p98
    %p101 = scmp.ne.s32.totalorder %s86, %s100
    %p102 = scmp.eq.s32.totalorder %s15, 0
    %p103 = por %p101, %p102
    %s104 = ssub.s32 %s16, %s28
    %p105 = scmp.eq.s32.totalorder %s104, 0
    %s107 = sadd.s32 %s106, 1
    %s108 = scalar_select %p105, %s106, %s107
    %p111 = pneg %p105
    %p112 = scmp.eq.s32.totalorder %s9, 1
    %p113 = por %p111, %p112
    %p114 = scmp.ne.s32.totalorder %s106, %s109
    %p115 = scmp.eq.s32.totalorder %s9, 0
    %p116 = por %p114, %p115
    %p117 = scmp.ne.s32.totalorder %s106, %s109
    %p118 = scmp.eq.s32.totalorder %s14, 1
    %p119 = por %p117, %p118
    %p120 = scmp.ne.s32.totalorder %s109, %s110
    %p121 = scmp.eq.s32.totalorder %s14, 0
    %p122 = por %p120, %p121
    %p123 = scmp.ne.s32.totalorder %s109, %s110
    %p124 = scmp.eq.s32.totalorder %s15, 1
    %p125 = por %p123, %p124
    %p127 = scmp.ne.s32.totalorder %s110, %s126
    %p128 = scmp.eq.s32.totalorder %s15, 0
    %p129 = por %p127, %p128
    %p130 = scmp.le.s32.totalorder 1, %s9
    %p131 = scmp.lt.s32.totalorder %s9, 3
    %p132 = pnand %p130, %p131
    %p133 = pneg %p132
    // Predicated region
    $region9: #{gnn_forward.3} parent=5 // pred_check
      _
    $region10: #{gnn_forward.3} parent=5 // pred_check_branch
      %135 = sbr.rel (%p132) target = $region12
    $region11: #{gnn_forward.3} parent=5 // pred_region
      %s136 = ssub.s32 %s9, 1
      // Predicated region
      $region13: #{gnn_forward.3} parent=11 // pred_check
        %p137 = pneg %p75
      $region14: #{gnn_forward.3} parent=11 // pred_check_branch
        %139 = sbr.rel (%p137) target = $region16
      $region15: #{gnn_forward.3} parent=11 // pred_region
        %s140 = smul.u32 16, %s19
        %p141 = scmp.lt.s32.totalorder %s140, 15
        %s142 = scalar_select %p141, %s140, 15
        %s143 = smul.addr %s142, 4
        %s144 = scalar_lea.vmem %s1, %s143
        %s145 = smul.u32 16, %s19
      $region16: #{gnn_forward.3} parent=11 // pred_fallthru
        _
      // Predicated region
      $region17: #{gnn_forward.3} parent=11 // pred_check
        %p146 = pneg %p96
      $region18: #{gnn_forward.3} parent=11 // pred_check_branch
        %148 = sbr.rel (%p146) target = $region20
      $region19: #{gnn_forward.3} parent=11 // pred_region
        _
      $region20: #{gnn_forward.3} parent=11 // pred_fallthru
        _
    $region12: #{gnn_forward.3} parent=5 // pred_fallthru
      _
    %p149 = scmp.lt.s32.totalorder %s9, 2
    // Predicated region
    $region21: #{gnn_forward.3} parent=5 // pred_check
      %p150 = pneg %p149
    $region22: #{gnn_forward.3} parent=5 // pred_check_branch
      %152 = sbr.rel (%p150) target = $region24
    $region23: #{gnn_forward.3} parent=5 // pred_region
      // Predicated region
      $region25: #{gnn_forward.3} parent=23 // pred_check
        %p153 = pneg %p43
      $region26: #{gnn_forward.3} parent=23 // pred_check_branch
        %155 = sbr.rel (%p153) target = $region28
      $region27: #{gnn_forward.3} parent=23 // pred_region
        %s156 = smul.u32 8, %s16
        %p157 = scmp.lt.s32.totalorder %s156, 15
        %s158 = scalar_select %p157, %s156, 15
        %p159 = scmp.lt.s32.totalorder %s17, 0
        %s160 = scalar_select %p159, %s17, 0
        %s161 = sadd.s32 %s160, %s158
        %s162 = smul.addr %s161, 4
        %s163 = scalar_lea.vmem %s0, %s162
        %s164 = smul.u32 8, %s16
      $region28: #{gnn_forward.3} parent=23 // pred_fallthru
        _
    $region24: #{gnn_forward.3} parent=5 // pred_fallthru
      _
    %p165 = scmp.le.s32.totalorder 1, %s9
    %p166 = scmp.lt.s32.totalorder %s9, 3
    %p167 = pnand %p165, %p166
    %p168 = pneg %p167
    // Predicated region
    $region29: #{gnn_forward.3} parent=5 // pred_check
      _
    $region30: #{gnn_forward.3} parent=5 // pred_check_branch
      %170 = sbr.rel (%p167) target = $region32
    $region31: #{gnn_forward.3} parent=5 // pred_region
      %s171 = ssub.s32 %s9, 1
      %s172 = smul.u32 8, %s18
      %p173 = scmp.lt.s32.totalorder %s172, 15
      %s174 = scalar_select %p173, %s172, 15
      %p175 = scmp.lt.s32.totalorder %s19, 0
      %s176 = scalar_select %p175, %s19, 0
      %s177 = sadd.s32 %s176, %s174
      %s178 = smul.addr %s177, 4
      %s179 = scalar_lea.vmem %s0, %s178
      %p180 = pneg %p49
      %p181 = pneg %p46
      %s182 = smul.u32 16, %s19
      %p183 = scmp.lt.s32.totalorder %s182, 15
      %s184 = scalar_select %p183, %s182, 15
      %s185 = smul.addr %s184, 4
      %s186 = scalar_lea.vmem %s1, %s185
      %p187 = pneg %p75
      %p188 = pneg %p72
      %p189 = pneg %p96
      %p190 = pneg %p93
      %p191 = pneg %p122
      %p192 = pneg %p119
      %s193 = smul.u32 8, %s18
      %p194 = scmp.lt.s32.totalorder %s193, 15
      %s195 = scalar_select %p194, %s193, 15
      %s196 = smul.addr %s195, 8
      %s197 = scalar_lea.vmem %s3, %s196
      %s198 = smul.u32 8, %s18
      %p199 = scmp.lt.s32.totalorder %s198, 15
      %s200 = scalar_select %p199, %s198, 15
      %p201 = scmp.lt.s32.totalorder %s19, 0
      %s202 = scalar_select %p201, %s19, 0
      %s203 = sadd.s32 %s202, %s200
      %s204 = smul.addr %s203, 4
      %s205 = scalar_lea.vmem %s0, %s204
      %s206 = smul.u32 8, %s18
      %s207 = smul.u32 16, %s19
      %p208 = scmp.lt.s32.totalorder %s207, 15
      %s209 = scalar_select %p208, %s207, 15
      %s210 = smul.addr %s209, 4
      %s211 = scalar_lea.vmem %s1, %s210
      %s212 = smul.u32 16, %s19
      %s213 = smul.u32 8, %s18
      %p214 = scmp.lt.s32.totalorder %s213, 15
      %s215 = scalar_select %p214, %s213, 15
      %s216 = smul.addr %s215, 8
      %s217 = scalar_lea.vmem %s3, %s216
      %s218 = smul.u32 8, %s18
      %p220 = scmp.eq.s32.totalorder %s19, 0
      // Predicated region
      $region33: #{gnn_forward.3} parent=31 // pred_check
        %p221 = pneg %p220
      $region34: #{gnn_forward.3} parent=31 // pred_check_branch
        %223 = sbr.rel (%p221) target = $region36
      $region35: #{gnn_forward.3} parent=31 // pred_region
        %224 = vst [vmem:[#allocation2] sm:$0xff] 0.0
        %225 = vst [vmem:[#allocation2 + $0x8] sm:$0xff] 0.0
        %226 = vst [vmem:[#allocation2 + $0x10] sm:$0xff] 0.0
        %227 = vst [vmem:[#allocation2 + $0x18] sm:$0xff] 0.0
        %228 = vst [vmem:[#allocation2 + $0x20] sm:$0xff] 0.0
        %229 = vst [vmem:[#allocation2 + $0x28] sm:$0xff] 0.0
        %230 = vst [vmem:[#allocation2 + $0x30] sm:$0xff] 0.0
        %231 = vst [vmem:[#allocation2 + $0x38] sm:$0xff] 0.0
      $region36: #{gnn_forward.3} parent=31 // pred_fallthru
        _
      %v232 = vld [vmem:[#allocation2] sm:$0xff]
      %v233 = vld [vmem:[#allocation2 + $0x8] sm:$0xff]
      %v234 = vld [vmem:[#allocation2 + $0x10] sm:$0xff]
      %v235 = vld [vmem:[#allocation2 + $0x18] sm:$0xff]
      %v236 = vld [vmem:[#allocation2 + $0x20] sm:$0xff]
      %v237 = vld [vmem:[#allocation2 + $0x28] sm:$0xff]
      %v238 = vld [vmem:[#allocation2 + $0x30] sm:$0xff]
      %v239 = vld [vmem:[#allocation2 + $0x38] sm:$0xff]
      %v240 = vld [vmem:[%s205] sm:$0xf]
      %v241 = vld [vmem:[%s205 + $0x4] sm:$0xf]
      %v242 = vld [vmem:[%s205 + $0x8] sm:$0xf]
      %v243 = vld [vmem:[%s205 + $0xc] sm:$0xf]
      %v244 = vld [vmem:[%s205 + $0x10] sm:$0xf]
      %v245 = vld [vmem:[%s205 + $0x14] sm:$0xf]
      %v246 = vld [vmem:[%s205 + $0x18] sm:$0xf]
      %v247 = vld [vmem:[%s205 + $0x1c] sm:$0xf]
      %v248 = vld [vmem:[%s211] sm:$0xf]
      %v249 = vld [vmem:[%s211 + $0x4] sm:$0xf]
      %v250 = vld [vmem:[%s211 + $0x8] sm:$0xf]
      %v251 = vld [vmem:[%s211 + $0xc] sm:$0xf]
      %v252 = vld [vmem:[%s211 + $0x10] sm:$0xf]
      %v253 = vld [vmem:[%s211 + $0x14] sm:$0xf]
      %v254 = vld [vmem:[%s211 + $0x18] sm:$0xf]
      %v255 = vld [vmem:[%s211 + $0x1c] sm:$0xf]
      %v256 = vld [vmem:[%s211 + $0x20] sm:$0xf]
      %v257 = vld [vmem:[%s211 + $0x24] sm:$0xf]
      %v258 = vld [vmem:[%s211 + $0x28] sm:$0xf]
      %v259 = vld [vmem:[%s211 + $0x2c] sm:$0xf]
      %v260 = vld [vmem:[%s211 + $0x30] sm:$0xf]
      %v261 = vld [vmem:[%s211 + $0x34] sm:$0xf]
      %v262 = vld [vmem:[%s211 + $0x38] sm:$0xf]
      %v263 = vld [vmem:[%s211 + $0x3c] sm:$0xf]
      %v272 = vunpack.c.l.b16 %v240
      %v273 = vunpack.c.l.b16 %v241
      %v274 = vunpack.c.l.b16 %v242
      %v275 = vunpack.c.l.b16 %v243
      %v276 = vunpack.c.l.b16 %v244
      %v277 = vunpack.c.l.b16 %v245
      %v278 = vunpack.c.l.b16 %v246
      %v279 = vunpack.c.l.b16 %v247
      %v280 = vpack.c.b16 %v273, %v272
      %v281 = vpack.c.b16 %v275, %v274
      %v282 = vpack.c.b16 %v277, %v276
      %v283 = vpack.c.b16 %v279, %v278
      %v304 = vunpack.c.l.b16 %v248
      %v305 = vunpack.c.l.b16 %v249
      %v306 = vunpack.c.l.b16 %v250
      %v307 = vunpack.c.l.b16 %v251
      %v308 = vunpack.c.l.b16 %v252
      %v309 = vunpack.c.l.b16 %v253
      %v310 = vunpack.c.l.b16 %v254
      %v311 = vunpack.c.l.b16 %v255
      %v312 = vunpack.c.l.b16 %v256
      %v313 = vunpack.c.l.b16 %v257
      %v314 = vunpack.c.l.b16 %v258
      %v315 = vunpack.c.l.b16 %v259
      %v316 = vunpack.c.l.b16 %v260
      %v317 = vunpack.c.l.b16 %v261
      %v318 = vunpack.c.l.b16 %v262
      %v319 = vunpack.c.l.b16 %v263
      %v320 = vpack.c.b16 %v305, %v304
      %v321 = vpack.c.b16 %v307, %v306
      %v322 = vpack.c.b16 %v309, %v308
      %v323 = vpack.c.b16 %v311, %v310
      %v324 = vpack.c.b16 %v313, %v312
      %v325 = vpack.c.b16 %v315, %v314
      %v326 = vpack.c.b16 %v317, %v316
      %v327 = vpack.c.b16 %v319, %v318
      %336 = vmatprep.subr.bf16.mxu0 0
      %337 = vmatpush1.bf16.msra.mxu0 %v320
      %338 = vmatprep.subr.bf16.mxu0 0
      %339 = vmatpush1.bf16.msra.mxu0 %v321
      %340 = vmatprep.subr.bf16.mxu0 0
      %341 = vmatpush1.bf16.msra.mxu0 %v322
      %342 = vmatprep.subr.bf16.mxu0 0
      %343 = vmatpush1.bf16.msra.mxu0 %v323
      %344 = vmatprep.subr.bf16.mxu0 0
      %345 = vmatpush1.bf16.msra.mxu0 %v324
      %346 = vmatprep.subr.bf16.mxu0 0
      %347 = vmatpush1.bf16.msra.mxu0 %v325
      %348 = vmatprep.subr.bf16.mxu0 0
      %349 = vmatpush1.bf16.msra.mxu0 %v326
      %350 = vmatprep.subr.bf16.mxu0 0
      %351 = vmatpush1.bf16.msra.mxu0 %v327
      %352 = vmatprep.subr.bf16.mxu0 0
      %353 = vmatpush1.bf16.msra.mxu0 0
      %354 = vmatprep.subr.bf16.mxu0 0
      %355 = vmatpush1.bf16.msra.mxu0 0
      %356 = vmatprep.subr.bf16.mxu0 0
      %357 = vmatpush1.bf16.msra.mxu0 0
      %358 = vmatprep.subr.bf16.mxu0 0
      %359 = vmatpush1.bf16.msra.mxu0 0
      %360 = vmatprep.subr.bf16.mxu0 0
      %361 = vmatpush1.bf16.msra.mxu0 0
      %362 = vmatprep.subr.bf16.mxu0 0
      %363 = vmatpush1.bf16.msra.mxu0 0
      %364 = vmatprep.subr.bf16.mxu0 0
      %365 = vmatpush1.bf16.msra.mxu0 0
      %366 = vmatprep.subr.bf16.mxu0 0
      %367 = vmatpush1.bf16.msra.mxu0 0
      %368 = vmatprep.mubr.bf16.mxu0 0
      %369 = vmatmul.mubr.bf16.gmra.mrb[0].mxu0 %v280
      %v370 = vpop.f32.mrb[0].mxu0
      %v371 = vadd.f32 0.0, %v370
      %v372 = vpop.f32.mrb[0].mxu0
      %v373 = vpop.f32.mrb[0].mxu0
      %v374 = vadd.f32 0.0, %v373
      %v375 = vpop.f32.mrb[0].mxu0
      %376 = vmatprep.mubr.bf16.mxu0 0
      %377 = vmatmul.mubr.bf16.gmra.mrb[0].mxu0 %v281
      %v378 = vpop.f32.mrb[0].mxu0
      %v379 = vadd.f32 0.0, %v378
      %v380 = vpop.f32.mrb[0].mxu0
      %v381 = vpop.f32.mrb[0].mxu0
      %v382 = vadd.f32 0.0, %v381
      %v383 = vpop.f32.mrb[0].mxu0
      %384 = vmatprep.mubr.bf16.mxu0 0
      %385 = vmatmul.mubr.bf16.gmra.mrb[0].mxu0 %v282
      %v386 = vpop.f32.mrb[0].mxu0
      %v387 = vadd.f32 0.0, %v386
      %v388 = vpop.f32.mrb[0].mxu0
      %v389 = vpop.f32.mrb[0].mxu0
      %v390 = vadd.f32 0.0, %v389
      %v391 = vpop.f32.mrb[0].mxu0
      %392 = vmatprep.mubr.bf16.mxu0 0
      %393 = vmatmul.mubr.bf16.gmra.mrb[0].mxu0 %v283
      %v394 = vpop.f32.mrb[0].mxu0
      %v395 = vadd.f32 0.0, %v394
      %v396 = vpop.f32.mrb[0].mxu0
      %v397 = vpop.f32.mrb[0].mxu0
      %v398 = vadd.f32 0.0, %v397
      %v399 = vpop.f32.mrb[0].mxu0
      %400 = vdwg.mxu0
      %v401 = vadd.f32 %v232, %v371
      %v402 = vadd.f32 %v233, %v374
      %v403 = vadd.f32 %v234, %v379
      %v404 = vadd.f32 %v235, %v382
      %v405 = vadd.f32 %v236, %v387
      %v406 = vadd.f32 %v237, %v390
      %v407 = vadd.f32 %v238, %v395
      %v408 = vadd.f32 %v239, %v398
      %409 = vst [vmem:[#allocation2] sm:$0xff] %v401
      %410 = vst [vmem:[#allocation2 + $0x8] sm:$0xff] %v402
      %411 = vst [vmem:[#allocation2 + $0x10] sm:$0xff] %v403
      %412 = vst [vmem:[#allocation2 + $0x18] sm:$0xff] %v404
      %413 = vst [vmem:[#allocation2 + $0x20] sm:$0xff] %v405
      %414 = vst [vmem:[#allocation2 + $0x28] sm:$0xff] %v406
      %415 = vst [vmem:[#allocation2 + $0x30] sm:$0xff] %v407
      %416 = vst [vmem:[#allocation2 + $0x38] sm:$0xff] %v408
      // Predicated region
      $region37: #{gnn_forward.3} parent=31 // pred_check
        %p417 = pneg %p220
      $region38: #{gnn_forward.3} parent=31 // pred_check_branch
        %419 = sbr.rel (%p417) target = $region40
      $region39: #{gnn_forward.3} parent=31 // pred_region
        %v420 = vld [vmem:[#allocation2] sm:$0xff]
        %v421 = vld [vmem:[#allocation2 + $0x8] sm:$0xff]
        %v422 = vld [vmem:[#allocation2 + $0x10] sm:$0xff]
        %v423 = vld [vmem:[#allocation2 + $0x18] sm:$0xff]
        %v424 = vld [vmem:[#allocation2 + $0x20] sm:$0xff]
        %v425 = vld [vmem:[#allocation2 + $0x28] sm:$0xff]
        %v426 = vld [vmem:[#allocation2 + $0x30] sm:$0xff]
        %v427 = vld [vmem:[#allocation2 + $0x38] sm:$0xff]
        %v428 = vld [vmem:[%s2] sm:$0x1]
        %v430 = vlaneseq
        %v431 = vshrl.u32 %v430, 7
        %v432 = vsub.s32 0, %v431
        %v433 = vrot.slane %v428, %v432
        %v435 = vadd.f32 %v420, %v433
        %v436 = vadd.f32 %v421, %v433
        %v437 = vadd.f32 %v422, %v433
        %v438 = vadd.f32 %v423, %v433
        %v439 = vadd.f32 %v424, %v433
        %v440 = vadd.f32 %v425, %v433
        %v441 = vadd.f32 %v426, %v433
        %v442 = vadd.f32 %v427, %v433
        %443 = vst [vmem:[%s217] sm:$0xff] %v435
        %444 = vst [vmem:[%s217 + $0x8] sm:$0xff] %v436
        %445 = vst [vmem:[%s217 + $0x10] sm:$0xff] %v437
        %446 = vst [vmem:[%s217 + $0x18] sm:$0xff] %v438
        %447 = vst [vmem:[%s217 + $0x20] sm:$0xff] %v439
        %448 = vst [vmem:[%s217 + $0x28] sm:$0xff] %v440
        %449 = vst [vmem:[%s217 + $0x30] sm:$0xff] %v441
        %450 = vst [vmem:[%s217 + $0x38] sm:$0xff] %v442
      $region40: #{gnn_forward.3} parent=31 // pred_fallthru
        _
      %s451 = smul.u32 8, %s18
      %p452 = scmp.lt.s32.totalorder %s451, 15
      %s453 = scalar_select %p452, %s451, 15
      %s454 = smul.addr %s453, 8
      %s455 = scalar_lea.vmem %s3, %s454
      // Predicated region
      $region41: #{gnn_forward.3} parent=31 // pred_check
        %p456 = pneg %p119
      $region42: #{gnn_forward.3} parent=31 // pred_check_branch
        %458 = sbr.rel (%p456) target = $region44
      $region43: #{gnn_forward.3} parent=31 // pred_region
        %s459 = smul.u32 8, %s18
      $region44: #{gnn_forward.3} parent=31 // pred_fallthru
        _
    $region32: #{gnn_forward.3} parent=5 // pred_fallthru
      _
    %p460 = scmp.le.s32.totalorder 2, %s9
    // Predicated region
    $region45: #{gnn_forward.3} parent=5 // pred_check
      %p461 = pneg %p460
    $region46: #{gnn_forward.3} parent=5 // pred_check_branch
      %463 = sbr.rel (%p461) target = $region48
    $region47: #{gnn_forward.3} parent=5 // pred_region
      %s464 = ssub.s32 %s9, 2
      // Predicated region
      $region49: #{gnn_forward.3} parent=47 // pred_check
        %p465 = pneg %p125
      $region50: #{gnn_forward.3} parent=47 // pred_check_branch
        %467 = sbr.rel (%p465) target = $region52
      $region51: #{gnn_forward.3} parent=47 // pred_region
        %s468 = smul.u32 8, %s20
        %p469 = scmp.lt.s32.totalorder %s468, 15
        %s470 = scalar_select %p469, %s468, 15
        %s471 = smul.addr %s470, 8
        %s472 = scalar_lea.vmem %s3, %s471
      $region52: #{gnn_forward.3} parent=47 // pred_fallthru
        _
    $region48: #{gnn_forward.3} parent=5 // pred_fallthru
      _
  $region6: #{gnn_forward.3} parent=0 // loop_footer
    %s13 = sadd.s32 1, %s9
  $region7: #{gnn_forward.3} parent=0 // loop_footer_branch
    %8 = sbr.rel target = $region3
  $region8: #{gnn_forward.3} parent=0 // loop_exit
    _

// kernel: gnn_forward.2
$region0: #{gnn_forward.2}
  #allocation0 [shape = 'u32[]', space=smem, size = 0x4, offset = 0x4, fixed_abs, tag = 'smem constant byte address 0x4 - core index']
  #allocation1 [shape = 'u32[144,128]{1,0:T(1,128)}', space=vmem, size = 0x12000, scoped, tag = 'internal scratch']
  #allocation2 [shape = 'f32[64,128]{1,0:T(8,128)}', space=vmem, size = 0x8000, scoped, tag = 'scratch operand']
  %s0 = inlined_call_operand.vmem [shape: bf16[128,128], index: 0, kind: input, shape index: {}]
  %s1 = inlined_call_operand.vmem [shape: bf16[128,128], index: 1, kind: input, shape index: {}]
  %s2 = inlined_call_operand.vmem [shape: bf16[128,128], index: 2, kind: input, shape index: {}]
  %s3 = inlined_call_operand.vmem [shape: f32[1,128], index: 3, kind: input, shape index: {}]
  %s4 = inlined_call_operand.vmem [shape: bf16[128,128], index: 4, kind: input, shape index: {}]
  %s5 = inlined_call_operand.vmem [shape: bf16[128,128], index: 5, kind: output, shape index: {}]
  %s6 = sld [smem:[#allocation0]]
  $region61: #{gnn_forward.2} parent=0
    _
  %s8 = ssub.s32 1, %s6
  %s9 = scalar_select 0, %s8, %s6
  loop: start=0, step=1, limit=4
  $region2: #{gnn_forward.2} parent=0 // loop_pre_header
    _
  $region3: #{gnn_forward.2} parent=0 // loop_header
    %s11 = sphi 0, %s15
    %p12 = scmp.ge.s32.totalorder %s11, 4
    %s18 = sphi 0, %s30
    %s19 = sphi 0, %s26
    %s20 = sphi 0, %s18
    %s21 = sphi 0, %s19
    %s22 = sphi 0, %s20
    %s23 = sphi 0, %s21
    %s35 = sphi 0, %s37
    %s38 = sphi 0, %s35
    %s39 = sphi 0, %s38
    %s55 = sphi 0, %s39
    %s61 = sphi 0, %s63
    %s64 = sphi 0, %s61
    %s65 = sphi 0, %s64
    %s81 = sphi 0, %s65
    %s85 = sphi 0, %s85
    %s87 = sphi 0, %s85
    %s88 = sphi 0, %s87
    %s102 = sphi 0, %s88
    %s106 = sphi 0, %s106
    %s108 = sphi 0, %s106
    %s109 = sphi 0, %s108
    %s123 = sphi 0, %s109
    %s127 = sphi 0, %s127
    %s129 = sphi 0, %s127
    %s130 = sphi 0, %s129
    %s144 = sphi 0, %s130
    %s150 = sphi 0, %s152
    %s153 = sphi 0, %s150
    %s154 = sphi 0, %s153
    %s170 = sphi 0, %s154
  $region4: #{gnn_forward.2} parent=0 // loop_header_branch
    %14 = sbr.rel (%p12) target = $region8
  $region5: #{gnn_forward.2} parent=0 // loop_body
    %s16 = ssub.s32 %s11, 1
    %s17 = ssub.s32 %s11, 2
    %s24 = sadd.s32 1, %s19
    %p25 = scmp.ge.s32.totalorder %s24, 1
    %s26 = scalar_select %p25, 0, %s24
    %s27 = sadd.s32 1, %s18
    %s28 = scalar_select %p25, %s27, %s18
    %p29 = scmp.ge.s32.totalorder %s28, 2
    %s30 = scalar_select %p29, 0, %s28
    %s31 = ssub.s32 %s18, %s30
    %s32 = ssub.s32 %s19, %s26
    %s33 = sor.u32 %s31, %s32
    %p34 = scmp.eq.s32.totalorder %s33, 0
    %s36 = sadd.s32 %s35, 1
    %s37 = scalar_select %p34, %s35, %s36
    %p40 = pneg %p34
    %p41 = scmp.eq.s32.totalorder %s11, 1
    %p42 = por %p40, %p41
    %p43 = scmp.ne.s32.totalorder %s35, %s38
    %p44 = scmp.eq.s32.totalorder %s11, 0
    %p45 = por %p43, %p44
    %p46 = scmp.ne.s32.totalorder %s35, %s38
    %p47 = scmp.eq.s32.totalorder %s16, 1
    %p48 = por %p46, %p47
    %p49 = scmp.ne.s32.totalorder %s38, %s39
    %p50 = scmp.eq.s32.totalorder %s16, 0
    %p51 = por %p49, %p50
    %p52 = scmp.ne.s32.totalorder %s38, %s39
    %p53 = scmp.eq.s32.totalorder %s17, 1
    %p54 = por %p52, %p53
    %p56 = scmp.ne.s32.totalorder %s39, %s55
    %p57 = scmp.eq.s32.totalorder %s17, 0
    %p58 = por %p56, %p57
    %s59 = ssub.s32 %s19, %s26
    %p60 = scmp.eq.s32.totalorder %s59, 0
    %s62 = sadd.s32 %s61, 1
    %s63 = scalar_select %p60, %s61, %s62
    %p66 = pneg %p60
    %p67 = scmp.eq.s32.totalorder %s11, 1
    %p68 = por %p66, %p67
    %p69 = scmp.ne.s32.totalorder %s61, %s64
    %p70 = scmp.eq.s32.totalorder %s11, 0
    %p71 = por %p69, %p70
    %p72 = scmp.ne.s32.totalorder %s61, %s64
    %p73 = scmp.eq.s32.totalorder %s16, 1
    %p74 = por %p72, %p73
    %p75 = scmp.ne.s32.totalorder %s64, %s65
    %p76 = scmp.eq.s32.totalorder %s16, 0
    %p77 = por %p75, %p76
    %p78 = scmp.ne.s32.totalorder %s64, %s65
    %p79 = scmp.eq.s32.totalorder %s17, 1
    %p80 = por %p78, %p79
    %p82 = scmp.ne.s32.totalorder %s65, %s81
    %p83 = scmp.eq.s32.totalorder %s17, 0
    %p84 = por %p82, %p83
    %s86 = sadd.s32 %s85, 1
    %p89 = scmp.eq.s32.totalorder %s11, 1
    %p90 = scmp.ne.s32.totalorder %s85, %s87
    %p91 = scmp.eq.s32.totalorder %s11, 0
    %p92 = por %p90, %p91
    %p93 = scmp.ne.s32.totalorder %s85, %s87
    %p94 = scmp.eq.s32.totalorder %s16, 1
    %p95 = por %p93, %p94
    %p96 = scmp.ne.s32.totalorder %s87, %s88
    %p97 = scmp.eq.s32.totalorder %s16, 0
    %p98 = por %p96, %p97
    %p99 = scmp.ne.s32.totalorder %s87, %s88
    %p100 = scmp.eq.s32.totalorder %s17, 1
    %p101 = por %p99, %p100
    %p103 = scmp.ne.s32.totalorder %s88, %s102
    %p104 = scmp.eq.s32.totalorder %s17, 0
    %p105 = por %p103, %p104
    %s107 = sadd.s32 %s106, 1
    %p110 = scmp.eq.s32.totalorder %s11, 1
    %p111 = scmp.ne.s32.totalorder %s106, %s108
    %p112 = scmp.eq.s32.totalorder %s11, 0
    %p113 = por %p111, %p112
    %p114 = scmp.ne.s32.totalorder %s106, %s108
    %p115 = scmp.eq.s32.totalorder %s16, 1
    %p116 = por %p114, %p115
    %p117 = scmp.ne.s32.totalorder %s108, %s109
    %p118 = scmp.eq.s32.totalorder %s16, 0
    %p119 = por %p117, %p118
    %p120 = scmp.ne.s32.totalorder %s108, %s109
    %p121 = scmp.eq.s32.totalorder %s17, 1
    %p122 = por %p120, %p121
    %p124 = scmp.ne.s32.totalorder %s109, %s123
    %p125 = scmp.eq.s32.totalorder %s17, 0
    %p126 = por %p124, %p125
    %s128 = sadd.s32 %s127, 1
    %p131 = scmp.eq.s32.totalorder %s11, 1
    %p132 = scmp.ne.s32.totalorder %s127, %s129
    %p133 = scmp.eq.s32.totalorder %s11, 0
    %p134 = por %p132, %p133
    %p135 = scmp.ne.s32.totalorder %s127, %s129
    %p136 = scmp.eq.s32.totalorder %s16, 1
    %p137 = por %p135, %p136
    %p138 = scmp.ne.s32.totalorder %s129, %s130
    %p139 = scmp.eq.s32.totalorder %s16, 0
    %p140 = por %p138, %p139
    %p141 = scmp.ne.s32.totalorder %s129, %s130
    %p142 = scmp.eq.s32.totalorder %s17, 1
    %p143 = por %p141, %p142
    %p145 = scmp.ne.s32.totalorder %s130, %s144
    %p146 = scmp.eq.s32.totalorder %s17, 0
    %p147 = por %p145, %p146
    %s148 = ssub.s32 %s18, %s30
    %p149 = scmp.eq.s32.totalorder %s148, 0
    %s151 = sadd.s32 %s150, 1
    %s152 = scalar_select %p149, %s150, %s151
    %p155 = pneg %p149
    %p156 = scmp.eq.s32.totalorder %s11, 1
    %p157 = por %p155, %p156
    %p158 = scmp.ne.s32.totalorder %s150, %s153
    %p159 = scmp.eq.s32.totalorder %s11, 0
    %p160 = por %p158, %p159
    %p161 = scmp.ne.s32.totalorder %s150, %s153
    %p162 = scmp.eq.s32.totalorder %s16, 1
    %p163 = por %p161, %p162
    %p164 = scmp.ne.s32.totalorder %s153, %s154
    %p165 = scmp.eq.s32.totalorder %s16, 0
    %p166 = por %p164, %p165
    %p167 = scmp.ne.s32.totalorder %s153, %s154
    %p168 = scmp.eq.s32.totalorder %s17, 1
    %p169 = por %p167, %p168
    %p171 = scmp.ne.s32.totalorder %s154, %s170
    %p172 = scmp.eq.s32.totalorder %s17, 0
    %p173 = por %p171, %p172
    %p174 = scmp.le.s32.totalorder 1, %s11
    %p175 = scmp.lt.s32.totalorder %s11, 3
    %p176 = pnand %p174, %p175
    %p177 = pneg %p176
    // Predicated region
    $region9: #{gnn_forward.2} parent=5 // pred_check
      _
    $region10: #{gnn_forward.2} parent=5 // pred_check_branch
      %179 = sbr.rel (%p176) target = $region12
    $region11: #{gnn_forward.2} parent=5 // pred_region
      %s180 = ssub.s32 %s11, 1
      // Predicated region
      $region13: #{gnn_forward.2} parent=11 // pred_check
        %p181 = pneg %p77
      $region14: #{gnn_forward.2} parent=11 // pred_check_branch
        %183 = sbr.rel (%p181) target = $region16
      $region15: #{gnn_forward.2} parent=11 // pred_region
        %s184 = smul.u32 16, %s21
        %p185 = scmp.lt.s32.totalorder %s184, 15
        %s186 = scalar_select %p185, %s184, 15
        %s187 = smul.addr %s186, 4
        %s188 = scalar_lea.vmem %s1, %s187
        %s189 = smul.u32 16, %s21
      $region16: #{gnn_forward.2} parent=11 // pred_fallthru
        _
      // Predicated region
      $region17: #{gnn_forward.2} parent=11 // pred_check
        %p190 = pneg %p98
      $region18: #{gnn_forward.2} parent=11 // pred_check_branch
        %192 = sbr.rel (%p190) target = $region20
      $region19: #{gnn_forward.2} parent=11 // pred_region
        _
      $region20: #{gnn_forward.2} parent=11 // pred_fallthru
        _
      // Predicated region
      $region21: #{gnn_forward.2} parent=11 // pred_check
        %p193 = pneg %p119
      $region22: #{gnn_forward.2} parent=11 // pred_check_branch
        %195 = sbr.rel (%p193) target = $region24
      $region23: #{gnn_forward.2} parent=11 // pred_region
        _
      $region24: #{gnn_forward.2} parent=11 // pred_fallthru
        _
      // Predicated region
      $region25: #{gnn_forward.2} parent=11 // pred_check
        %p196 = pneg %p140
      $region26: #{gnn_forward.2} parent=11 // pred_check_branch
        %198 = sbr.rel (%p196) target = $region28
      $region27: #{gnn_forward.2} parent=11 // pred_region
        _
      $region28: #{gnn_forward.2} parent=11 // pred_fallthru
        _
    $region12: #{gnn_forward.2} parent=5 // pred_fallthru
      _
    %p199 = scmp.lt.s32.totalorder %s11, 2
    // Predicated region
    $region29: #{gnn_forward.2} parent=5 // pred_check
      %p200 = pneg %p199
    $region30: #{gnn_forward.2} parent=5 // pred_check_branch
      %202 = sbr.rel (%p200) target = $region32
    $region31: #{gnn_forward.2} parent=5 // pred_region
      // Predicated region
      $region33: #{gnn_forward.2} parent=31 // pred_check
        %p203 = pneg %p45
      $region34: #{gnn_forward.2} parent=31 // pred_check_branch
        %205 = sbr.rel (%p203) target = $region36
      $region35: #{gnn_forward.2} parent=31 // pred_region
        %s206 = smul.u32 8, %s18
        %p207 = scmp.lt.s32.totalorder %s206, 15
        %s208 = scalar_select %p207, %s206, 15
        %p209 = scmp.lt.s32.totalorder %s19, 0
        %s210 = scalar_select %p209, %s19, 0
        %s211 = sadd.s32 %s210, %s208
        %s212 = smul.addr %s211, 4
        %s213 = scalar_lea.vmem %s0, %s212
        %s214 = smul.u32 8, %s18
      $region36: #{gnn_forward.2} parent=31 // pred_fallthru
        _
    $region32: #{gnn_forward.2} parent=5 // pred_fallthru
      _
    %p215 = scmp.le.s32.totalorder 1, %s11
    %p216 = scmp.lt.s32.totalorder %s11, 3
    %p217 = pnand %p215, %p216
    %p218 = pneg %p217
    // Predicated region
    $region37: #{gnn_forward.2} parent=5 // pred_check
      _
    $region38: #{gnn_forward.2} parent=5 // pred_check_branch
      %220 = sbr.rel (%p217) target = $region40
    $region39: #{gnn_forward.2} parent=5 // pred_region
      %s221 = ssub.s32 %s11, 1
      %s222 = smul.u32 8, %s20
      %p223 = scmp.lt.s32.totalorder %s222, 15
      %s224 = scalar_select %p223, %s222, 15
      %p225 = scmp.lt.s32.totalorder %s21, 0
      %s226 = scalar_select %p225, %s21, 0
      %s227 = sadd.s32 %s226, %s224
      %s228 = smul.addr %s227, 4
      %s229 = scalar_lea.vmem %s0, %s228
      %p230 = pneg %p51
      %p231 = pneg %p48
      %s232 = smul.u32 16, %s21
      %p233 = scmp.lt.s32.totalorder %s232, 15
      %s234 = scalar_select %p233, %s232, 15
      %s235 = smul.addr %s234, 4
      %s236 = scalar_lea.vmem %s1, %s235
      %p237 = pneg %p77
      %p238 = pneg %p74
      %p239 = pneg %p98
      %p240 = pneg %p95
      %p241 = pneg %p119
      %p242 = pneg %p116
      %p243 = pneg %p140
      %p244 = pneg %p137
      %p245 = pneg %p166
      %p246 = pneg %p163
      %s247 = smul.u32 8, %s20
      %p248 = scmp.lt.s32.totalorder %s247, 15
      %s249 = scalar_select %p248, %s247, 15
      %s250 = smul.addr %s249, 4
      %s251 = scalar_lea.vmem %s5, %s250
      %s252 = smul.u32 8, %s20
      %p253 = scmp.lt.s32.totalorder %s252, 15
      %s254 = scalar_select %p253, %s252, 15
      %p255 = scmp.lt.s32.totalorder %s21, 0
      %s256 = scalar_select %p255, %s21, 0
      %s257 = sadd.s32 %s256, %s254
      %s258 = smul.addr %s257, 4
      %s259 = scalar_lea.vmem %s0, %s258
      %s260 = smul.u32 8, %s20
      %s261 = smul.u32 16, %s21
      %p262 = scmp.lt.s32.totalorder %s261, 15
      %s263 = scalar_select %p262, %s261, 15
      %s264 = smul.addr %s263, 4
      %s265 = scalar_lea.vmem %s1, %s264
      %s266 = smul.u32 16, %s21
      %s267 = smul.u32 8, %s20
      %p268 = scmp.lt.s32.totalorder %s267, 15
      %s269 = scalar_select %p268, %s267, 15
      %s270 = smul.addr %s269, 4
      %s271 = scalar_lea.vmem %s5, %s270
      %s272 = smul.u32 8, %s20
      %p274 = scmp.eq.s32.totalorder %s21, 0
      // Predicated region
      $region41: #{gnn_forward.2} parent=39 // pred_check
        %p275 = pneg %p274
      $region42: #{gnn_forward.2} parent=39 // pred_check_branch
        %277 = sbr.rel (%p275) target = $region44
      $region43: #{gnn_forward.2} parent=39 // pred_region
        %278 = vst [vmem:[#allocation2] sm:$0xff] 0.0
        %279 = vst [vmem:[#allocation2 + $0x8] sm:$0xff] 0.0
        %280 = vst [vmem:[#allocation2 + $0x10] sm:$0xff] 0.0
        %281 = vst [vmem:[#allocation2 + $0x18] sm:$0xff] 0.0
        %282 = vst [vmem:[#allocation2 + $0x20] sm:$0xff] 0.0
        %283 = vst [vmem:[#allocation2 + $0x28] sm:$0xff] 0.0
        %284 = vst [vmem:[#allocation2 + $0x30] sm:$0xff] 0.0
        %285 = vst [vmem:[#allocation2 + $0x38] sm:$0xff] 0.0
      $region44: #{gnn_forward.2} parent=39 // pred_fallthru
        _
      %v286 = vld [vmem:[#allocation2] sm:$0xff]
      %v287 = vld [vmem:[#allocation2 + $0x8] sm:$0xff]
      %v288 = vld [vmem:[#allocation2 + $0x10] sm:$0xff]
      %v289 = vld [vmem:[#allocation2 + $0x18] sm:$0xff]
      %v290 = vld [vmem:[#allocation2 + $0x20] sm:$0xff]
      %v291 = vld [vmem:[#allocation2 + $0x28] sm:$0xff]
      %v292 = vld [vmem:[#allocation2 + $0x30] sm:$0xff]
      %v293 = vld [vmem:[#allocation2 + $0x38] sm:$0xff]
      %v294 = vld [vmem:[%s259] sm:$0xf]
      %v295 = vld [vmem:[%s259 + $0x4] sm:$0xf]
      %v296 = vld [vmem:[%s259 + $0x8] sm:$0xf]
      %v297 = vld [vmem:[%s259 + $0xc] sm:$0xf]
      %v298 = vld [vmem:[%s259 + $0x10] sm:$0xf]
      %v299 = vld [vmem:[%s259 + $0x14] sm:$0xf]
      %v300 = vld [vmem:[%s259 + $0x18] sm:$0xf]
      %v301 = vld [vmem:[%s259 + $0x1c] sm:$0xf]
      %v302 = vld [vmem:[%s265] sm:$0xf]
      %v303 = vld [vmem:[%s265 + $0x4] sm:$0xf]
      %v304 = vld [vmem:[%s265 + $0x8] sm:$0xf]
      %v305 = vld [vmem:[%s265 + $0xc] sm:$0xf]
      %v306 = vld [vmem:[%s265 + $0x10] sm:$0xf]
      %v307 = vld [vmem:[%s265 + $0x14] sm:$0xf]
      %v308 = vld [vmem:[%s265 + $0x18] sm:$0xf]
      %v309 = vld [vmem:[%s265 + $0x1c] sm:$0xf]
      %v310 = vld [vmem:[%s265 + $0x20] sm:$0xf]
      %v311 = vld [vmem:[%s265 + $0x24] sm:$0xf]
      %v312 = vld [vmem:[%s265 + $0x28] sm:$0xf]
      %v313 = vld [vmem:[%s265 + $0x2c] sm:$0xf]
      %v314 = vld [vmem:[%s265 + $0x30] sm:$0xf]
      %v315 = vld [vmem:[%s265 + $0x34] sm:$0xf]
      %v316 = vld [vmem:[%s265 + $0x38] sm:$0xf]
      %v317 = vld [vmem:[%s265 + $0x3c] sm:$0xf]
      %v326 = vunpack.c.l.b16 %v294
      %v327 = vunpack.c.l.b16 %v295
      %v328 = vunpack.c.l.b16 %v296
      %v329 = vunpack.c.l.b16 %v297
      %v330 = vunpack.c.l.b16 %v298
      %v331 = vunpack.c.l.b16 %v299
      %v332 = vunpack.c.l.b16 %v300
      %v333 = vunpack.c.l.b16 %v301
      %v334 = vpack.c.b16 %v327, %v326
      %v335 = vpack.c.b16 %v329, %v328
      %v336 = vpack.c.b16 %v331, %v330
      %v337 = vpack.c.b16 %v333, %v332
      %v358 = vunpack.c.l.b16 %v302
      %v359 = vunpack.c.l.b16 %v303
      %v360 = vunpack.c.l.b16 %v304
      %v361 = vunpack.c.l.b16 %v305
      %v362 = vunpack.c.l.b16 %v306
      %v363 = vunpack.c.l.b16 %v307
      %v364 = vunpack.c.l.b16 %v308
      %v365 = vunpack.c.l.b16 %v309
      %v366 = vunpack.c.l.b16 %v310
      %v367 = vunpack.c.l.b16 %v311
      %v368 = vunpack.c.l.b16 %v312
      %v369 = vunpack.c.l.b16 %v313
      %v370 = vunpack.c.l.b16 %v314
      %v371 = vunpack.c.l.b16 %v315
      %v372 = vunpack.c.l.b16 %v316
      %v373 = vunpack.c.l.b16 %v317
      %v374 = vpack.c.b16 %v359, %v358
      %v375 = vpack.c.b16 %v361, %v360
      %v376 = vpack.c.b16 %v363, %v362
      %v377 = vpack.c.b16 %v365, %v364
      %v378 = vpack.c.b16 %v367, %v366
      %v379 = vpack.c.b16 %v369, %v368
      %v380 = vpack.c.b16 %v371, %v370
      %v381 = vpack.c.b16 %v373, %v372
      %390 = vmatprep.subr.bf16.mxu0 0
      %391 = vmatpush1.bf16.msra.mxu0 %v374
      %392 = vmatprep.subr.bf16.mxu0 0
      %393 = vmatpush1.bf16.msra.mxu0 %v375
      %394 = vmatprep.subr.bf16.mxu0 0
      %395 = vmatpush1.bf16.msra.mxu0 %v376
      %396 = vmatprep.subr.bf16.mxu0 0
      %397 = vmatpush1.bf16.msra.mxu0 %v377
      %398 = vmatprep.subr.bf16.mxu0 0
      %399 = vmatpush1.bf16.msra.mxu0 %v378
      %400 = vmatprep.subr.bf16.mxu0 0
      %401 = vmatpush1.bf16.msra.mxu0 %v379
      %402 = vmatprep.subr.bf16.mxu0 0
      %403 = vmatpush1.bf16.msra.mxu0 %v380
      %404 = vmatprep.subr.bf16.mxu0 0
      %405 = vmatpush1.bf16.msra.mxu0 %v381
      %406 = vmatprep.subr.bf16.mxu0 0
      %407 = vmatpush1.bf16.msra.mxu0 0
      %408 = vmatprep.subr.bf16.mxu0 0
      %409 = vmatpush1.bf16.msra.mxu0 0
      %410 = vmatprep.subr.bf16.mxu0 0
      %411 = vmatpush1.bf16.msra.mxu0 0
      %412 = vmatprep.subr.bf16.mxu0 0
      %413 = vmatpush1.bf16.msra.mxu0 0
      %414 = vmatprep.subr.bf16.mxu0 0
      %415 = vmatpush1.bf16.msra.mxu0 0
      %416 = vmatprep.subr.bf16.mxu0 0
      %417 = vmatpush1.bf16.msra.mxu0 0
      %418 = vmatprep.subr.bf16.mxu0 0
      %419 = vmatpush1.bf16.msra.mxu0 0
      %420 = vmatprep.subr.bf16.mxu0 0
      %421 = vmatpush1.bf16.msra.mxu0 0
      %422 = vmatprep.mubr.bf16.mxu0 0
      %423 = vmatmul.mubr.bf16.gmra.mrb[0].mxu0 %v334
      %v424 = vpop.f32.mrb[0].mxu0
      %v425 = vadd.f32 0.0, %v424
      %v426 = vpop.f32.mrb[0].mxu0
      %v427 = vpop.f32.mrb[0].mxu0
      %v428 = vadd.f32 0.0, %v427
      %v429 = vpop.f32.mrb[0].mxu0
      %430 = vmatprep.mubr.bf16.mxu0 0
      %431 = vmatmul.mubr.bf16.gmra.mrb[0].mxu0 %v335
      %v432 = vpop.f32.mrb[0].mxu0
      %v433 = vadd.f32 0.0, %v432
      %v434 = vpop.f32.mrb[0].mxu0
      %v435 = vpop.f32.mrb[0].mxu0
      %v436 = vadd.f32 0.0, %v435
      %v437 = vpop.f32.mrb[0].mxu0
      %438 = vmatprep.mubr.bf16.mxu0 0
      %439 = vmatmul.mubr.bf16.gmra.mrb[0].mxu0 %v336
      %v440 = vpop.f32.mrb[0].mxu0
      %v441 = vadd.f32 0.0, %v440
      %v442 = vpop.f32.mrb[0].mxu0
      %v443 = vpop.f32.mrb[0].mxu0
      %v444 = vadd.f32 0.0, %v443
      %v445 = vpop.f32.mrb[0].mxu0
      %446 = vmatprep.mubr.bf16.mxu0 0
      %447 = vmatmul.mubr.bf16.gmra.mrb[0].mxu0 %v337
      %v448 = vpop.f32.mrb[0].mxu0
      %v449 = vadd.f32 0.0, %v448
      %v450 = vpop.f32.mrb[0].mxu0
      %v451 = vpop.f32.mrb[0].mxu0
      %v452 = vadd.f32 0.0, %v451
      %v453 = vpop.f32.mrb[0].mxu0
      %454 = vdwg.mxu0
      %v455 = vadd.f32 %v286, %v425
      %v456 = vadd.f32 %v287, %v428
      %v457 = vadd.f32 %v288, %v433
      %v458 = vadd.f32 %v289, %v436
      %v459 = vadd.f32 %v290, %v441
      %v460 = vadd.f32 %v291, %v444
      %v461 = vadd.f32 %v292, %v449
      %v462 = vadd.f32 %v293, %v452
      %463 = vst [vmem:[#allocation2] sm:$0xff] %v455
      %464 = vst [vmem:[#allocation2 + $0x8] sm:$0xff] %v456
      %465 = vst [vmem:[#allocation2 + $0x10] sm:$0xff] %v457
      %466 = vst [vmem:[#allocation2 + $0x18] sm:$0xff] %v458
      %467 = vst [vmem:[#allocation2 + $0x20] sm:$0xff] %v459
      %468 = vst [vmem:[#allocation2 + $0x28] sm:$0xff] %v460
      %469 = vst [vmem:[#allocation2 + $0x30] sm:$0xff] %v461
      %470 = vst [vmem:[#allocation2 + $0x38] sm:$0xff] %v462
      // Predicated region
      $region45: #{gnn_forward.2} parent=39 // pred_check
        %p471 = pneg %p274
      $region46: #{gnn_forward.2} parent=39 // pred_check_branch
        %473 = sbr.rel (%p471) target = $region48
      $region47: #{gnn_forward.2} parent=39 // pred_region
        %v474 = vld [vmem:[#allocation2] sm:$0xff]
        %v475 = vld [vmem:[#allocation2 + $0x8] sm:$0xff]
        %v476 = vld [vmem:[#allocation2 + $0x10] sm:$0xff]
        %v477 = vld [vmem:[#allocation2 + $0x18] sm:$0xff]
        %v478 = vld [vmem:[#allocation2 + $0x20] sm:$0xff]
        %v479 = vld [vmem:[#allocation2 + $0x28] sm:$0xff]
        %v480 = vld [vmem:[#allocation2 + $0x30] sm:$0xff]
        %v481 = vld [vmem:[#allocation2 + $0x38] sm:$0xff]
        %v482 = vld [vmem:[%s2] sm:$0xf]
        %v483 = vld [vmem:[%s2 + $0x4] sm:$0xf]
        %v484 = vld [vmem:[%s2 + $0x8] sm:$0xf]
        %v485 = vld [vmem:[%s2 + $0xc] sm:$0xf]
        %v486 = vld [vmem:[%s2 + $0x10] sm:$0xf]
        %v487 = vld [vmem:[%s2 + $0x14] sm:$0xf]
        %v488 = vld [vmem:[%s2 + $0x18] sm:$0xf]
        %v489 = vld [vmem:[%s2 + $0x1c] sm:$0xf]
        %v490 = vld [vmem:[%s2 + $0x20] sm:$0xf]
        %v491 = vld [vmem:[%s2 + $0x24] sm:$0xf]
        %v492 = vld [vmem:[%s2 + $0x28] sm:$0xf]
        %v493 = vld [vmem:[%s2 + $0x2c] sm:$0xf]
        %v494 = vld [vmem:[%s2 + $0x30] sm:$0xf]
        %v495 = vld [vmem:[%s2 + $0x34] sm:$0xf]
        %v496 = vld [vmem:[%s2 + $0x38] sm:$0xf]
        %v497 = vld [vmem:[%s2 + $0x3c] sm:$0xf]
        %v498 = vunpack.c.l.bf16 %v482
        %v499 = vunpack.c.l.bf16 %v483
        %v500 = vunpack.c.l.bf16 %v484
        %v501 = vunpack.c.l.bf16 %v485
        %v502 = vunpack.c.l.bf16 %v486
        %v503 = vunpack.c.l.bf16 %v487
        %v504 = vunpack.c.l.bf16 %v488
        %v505 = vunpack.c.l.bf16 %v489
        %v506 = vunpack.c.l.bf16 %v490
        %v507 = vunpack.c.l.bf16 %v491
        %v508 = vunpack.c.l.bf16 %v492
        %v509 = vunpack.c.l.bf16 %v493
        %v510 = vunpack.c.l.bf16 %v494
        %v511 = vunpack.c.l.bf16 %v495
        %v512 = vunpack.c.l.bf16 %v496
        %v513 = vunpack.c.l.bf16 %v497
        %v514 = vld [vmem:[%s3] sm:$0x1]
        %v516 = vlaneseq
        %v517 = vshrl.u32 %v516, 7
        %v518 = vsub.s32 0, %v517
        %v519 = vrot.slane %v514, %v518
        %521 = vmatprep.subr.mxu0 0.0
        %522 = vmatpush1.msra.mxu0 %v498
        %523 = vmatprep.subr.mxu0 0.0
        %524 = vmatpush1.msra.mxu0 %v499
        %525 = vmatprep.subr.mxu0 0.0
        %526 = vmatpush1.msra.mxu0 %v500
        %527 = vmatprep.subr.mxu0 0.0
        %528 = vmatpush1.msra.mxu0 %v501
        %529 = vmatprep.subr.mxu0 0.0
        %530 = vmatpush1.msra.mxu0 %v502
        %531 = vmatprep.subr.mxu0 0.0
        %532 = vmatpush1.msra.mxu0 %v503
        %533 = vmatprep.subr.mxu0 0.0
        %534 = vmatpush1.msra.mxu0 %v504
        %535 = vmatprep.subr.mxu0 0.0
        %536 = vmatpush1.msra.mxu0 %v505
        %537 = vmatprep.subr.mxu0 0.0
        %538 = vmatpush1.msra.mxu0 %v506
        %539 = vmatprep.subr.mxu0 0.0
        %540 = vmatpush1.msra.mxu0 %v507
        %541 = vmatprep.subr.mxu0 0.0
        %542 = vmatpush1.msra.mxu0 %v508
        %543 = vmatprep.subr.mxu0 0.0
        %544 = vmatpush1.msra.mxu0 %v509
        %545 = vmatprep.subr.mxu0 0.0
        %546 = vmatpush1.msra.mxu0 %v510
        %547 = vmatprep.subr.mxu0 0.0
        %548 = vmatpush1.msra.mxu0 %v511
        %549 = vmatprep.subr.mxu0 0.0
        %550 = vmatpush1.msra.mxu0 %v512
        %551 = vmatprep.subr.mxu0 0.0
        %552 = vmatpush1.msra.mxu0 %v513
        %553 = vmatprep.subr.mxu0 0.0
        %554 = vmatpush1.msra.mxu0 0.0
        %555 = vmatprep.subr.mxu0 0.0
        %556 = vmatpush1.msra.mxu0 0.0
        %557 = vmatprep.subr.mxu0 0.0
        %558 = vmatpush1.msra.mxu0 0.0
        %559 = vmatprep.subr.mxu0 0.0
        %560 = vmatpush1.msra.mxu0 0.0
        %561 = vmatprep.subr.mxu0 0.0
        %562 = vmatpush1.msra.mxu0 0.0
        %563 = vmatprep.subr.mxu0 0.0
        %564 = vmatpush1.msra.mxu0 0.0
        %565 = vmatprep.subr.mxu0 0.0
        %566 = vmatpush1.msra.mxu0 0.0
        %567 = vmatprep.subr.mxu0 0.0
        %568 = vmatpush1.msra.mxu0 0.0
        %569 = vmatprep.subr.mxu0 0.0
        %570 = vmatpush1.msra.mxu0 0.0
        %571 = vmatprep.subr.mxu0 0.0
        %572 = vmatpush1.msra.mxu0 0.0
        %573 = vmatprep.subr.mxu0 0.0
        %574 = vmatpush1.msra.mxu0 0.0
        %575 = vmatprep.subr.mxu0 0.0
        %576 = vmatpush1.msra.mxu0 0.0
        %577 = vmatprep.subr.mxu0 0.0
        %578 = vmatpush1.msra.mxu0 0.0
        %579 = vmatprep.subr.mxu0 0.0
        %580 = vmatpush1.msra.mxu0 0.0
        %581 = vmatprep.subr.mxu0 0.0
        %582 = vmatpush1.msra.mxu0 0.0
        %583 = vmatprep.subr.mxu0 0.0
        %584 = vmatpush1.msra.mxu0 0.0
        %585 = vmatprep.mubr.f32.mxu0 0.0
        %586 = vmatmul.mubr.f32.gmra.mrb[0].mxu0 %v474
        %v587 = vpop.f32.mrb[0].mxu0
        %v588 = vadd.f32 %v519, %v587
        %v589 = vpop.f32.mrb[0].mxu0
        %590 = vmatprep.mubr.f32.mxu0 0.0
        %591 = vmatmul.mubr.f32.gmra.mrb[0].mxu0 %v475
        %v592 = vpop.f32.mrb[0].mxu0
        %v593 = vadd.f32 %v519, %v592
        %v594 = vpop.f32.mrb[0].mxu0
        %595 = vmatprep.mubr.f32.mxu0 0.0
        %596 = vmatmul.mubr.f32.gmra.mrb[0].mxu0 %v476
        %v597 = vpop.f32.mrb[0].mxu0
        %v598 = vadd.f32 %v519, %v597
        %v599 = vpop.f32.mrb[0].mxu0
        %600 = vmatprep.mubr.f32.mxu0 0.0
        %601 = vmatmul.mubr.f32.gmra.mrb[0].mxu0 %v477
        %v602 = vpop.f32.mrb[0].mxu0
        %v603 = vadd.f32 %v519, %v602
        %v604 = vpop.f32.mrb[0].mxu0
        %605 = vmatprep.mubr.f32.mxu0 0.0
        %606 = vmatmul.mubr.f32.gmra.mrb[0].mxu0 %v478
        %v607 = vpop.f32.mrb[0].mxu0
        %v608 = vadd.f32 %v519, %v607
        %v609 = vpop.f32.mrb[0].mxu0
        %610 = vmatprep.mubr.f32.mxu0 0.0
        %611 = vmatmul.mubr.f32.gmra.mrb[0].mxu0 %v479
        %v612 = vpop.f32.mrb[0].mxu0
        %v613 = vadd.f32 %v519, %v612
        %v614 = vpop.f32.mrb[0].mxu0
        %615 = vmatprep.mubr.f32.mxu0 0.0
        %616 = vmatmul.mubr.f32.gmra.mrb[0].mxu0 %v480
        %v617 = vpop.f32.mrb[0].mxu0
        %v618 = vadd.f32 %v519, %v617
        %v619 = vpop.f32.mrb[0].mxu0
        %620 = vmatprep.mubr.f32.mxu0 0.0
        %621 = vmatmul.mubr.f32.gmra.mrb[0].mxu0 %v481
        %v622 = vpop.f32.mrb[0].mxu0
        %v623 = vadd.f32 %v519, %v622
        %v624 = vpop.f32.mrb[0].mxu0
        %625 = vdwg.mxu0
        %v626 = vmax.f32 %v588, 0.0
        %v627 = vmax.f32 %v593, 0.0
        %v628 = vmax.f32 %v598, 0.0
        %v629 = vmax.f32 %v603, 0.0
        %v630 = vmax.f32 %v608, 0.0
        %v631 = vmax.f32 %v613, 0.0
        %v632 = vmax.f32 %v618, 0.0
        %v633 = vmax.f32 %v623, 0.0
        %v634 = vpack.c.bf16 %v627, %v626
        %v635 = vpack.c.bf16 %v629, %v628
        %v636 = vpack.c.bf16 %v631, %v630
        %v637 = vpack.c.bf16 %v633, %v632
        %v638 = vld [vmem:[%s4] sm:$0xf]
        %v639 = vld [vmem:[%s4 + $0x4] sm:$0xf]
        %v640 = vld [vmem:[%s4 + $0x8] sm:$0xf]
        %v641 = vld [vmem:[%s4 + $0xc] sm:$0xf]
        %v642 = vld [vmem:[%s4 + $0x10] sm:$0xf]
        %v643 = vld [vmem:[%s4 + $0x14] sm:$0xf]
        %v644 = vld [vmem:[%s4 + $0x18] sm:$0xf]
        %v645 = vld [vmem:[%s4 + $0x1c] sm:$0xf]
        %v646 = vld [vmem:[%s4 + $0x20] sm:$0xf]
        %v647 = vld [vmem:[%s4 + $0x24] sm:$0xf]
        %v648 = vld [vmem:[%s4 + $0x28] sm:$0xf]
        %v649 = vld [vmem:[%s4 + $0x2c] sm:$0xf]
        %v650 = vld [vmem:[%s4 + $0x30] sm:$0xf]
        %v651 = vld [vmem:[%s4 + $0x34] sm:$0xf]
        %v652 = vld [vmem:[%s4 + $0x38] sm:$0xf]
        %v653 = vld [vmem:[%s4 + $0x3c] sm:$0xf]
        %v670 = vunpack.c.l.b16 %v638
        %v671 = vunpack.c.l.b16 %v639
        %v672 = vunpack.c.l.b16 %v640
        %v673 = vunpack.c.l.b16 %v641
        %v674 = vunpack.c.l.b16 %v642
        %v675 = vunpack.c.l.b16 %v643
        %v676 = vunpack.c.l.b16 %v644
        %v677 = vunpack.c.l.b16 %v645
        %v678 = vunpack.c.l.b16 %v646
        %v679 = vunpack.c.l.b16 %v647
        %v680 = vunpack.c.l.b16 %v648
        %v681 = vunpack.c.l.b16 %v649
        %v682 = vunpack.c.l.b16 %v650
        %v683 = vunpack.c.l.b16 %v651
        %v684 = vunpack.c.l.b16 %v652
        %v685 = vunpack.c.l.b16 %v653
        %v686 = vpack.c.b16 %v671, %v670
        %v687 = vpack.c.b16 %v673, %v672
        %v688 = vpack.c.b16 %v675, %v674
        %v689 = vpack.c.b16 %v677, %v676
        %v690 = vpack.c.b16 %v679, %v678
        %v691 = vpack.c.b16 %v681, %v680
        %v692 = vpack.c.b16 %v683, %v682
        %v693 = vpack.c.b16 %v685, %v684
        %702 = vmatprep.subr.bf16.mxu0 0
        %703 = vmatpush1.bf16.msra.mxu0 %v686
        %704 = vmatprep.subr.bf16.mxu0 0
        %705 = vmatpush1.bf16.msra.mxu0 %v687
        %706 = vmatprep.subr.bf16.mxu0 0
        %707 = vmatpush1.bf16.msra.mxu0 %v688
        %708 = vmatprep.subr.bf16.mxu0 0
        %709 = vmatpush1.bf16.msra.mxu0 %v689
        %710 = vmatprep.subr.bf16.mxu0 0
        %711 = vmatpush1.bf16.msra.mxu0 %v690
        %712 = vmatprep.subr.bf16.mxu0 0
        %713 = vmatpush1.bf16.msra.mxu0 %v691
        %714 = vmatprep.subr.bf16.mxu0 0
        %715 = vmatpush1.bf16.msra.mxu0 %v692
        %716 = vmatprep.subr.bf16.mxu0 0
        %717 = vmatpush1.bf16.msra.mxu0 %v693
        %718 = vmatprep.subr.bf16.mxu0 0
        %719 = vmatpush1.bf16.msra.mxu0 0
        %720 = vmatprep.subr.bf16.mxu0 0
        %721 = vmatpush1.bf16.msra.mxu0 0
        %722 = vmatprep.subr.bf16.mxu0 0
        %723 = vmatpush1.bf16.msra.mxu0 0
        %724 = vmatprep.subr.bf16.mxu0 0
        %725 = vmatpush1.bf16.msra.mxu0 0
        %726 = vmatprep.subr.bf16.mxu0 0
        %727 = vmatpush1.bf16.msra.mxu0 0
        %728 = vmatprep.subr.bf16.mxu0 0
        %729 = vmatpush1.bf16.msra.mxu0 0
        %730 = vmatprep.subr.bf16.mxu0 0
        %731 = vmatpush1.bf16.msra.mxu0 0
        %732 = vmatprep.subr.bf16.mxu0 0
        %733 = vmatpush1.bf16.msra.mxu0 0
        %734 = vmatprep.mubr.bf16.mxu0 0
        %735 = vmatmul.mubr.bf16.gmra.mrb[0].mxu0 %v634
        %v736 = vpop.f32.mrb[0].mxu0
        %v737 = vadd.f32 0.0, %v736
        %v738 = vpop.f32.mrb[0].mxu0
        %v739 = vpop.f32.mrb[0].mxu0
        %v740 = vadd.f32 0.0, %v739
        %v741 = vpop.f32.mrb[0].mxu0
        %742 = vmatprep.mubr.bf16.mxu0 0
        %743 = vmatmul.mubr.bf16.gmra.mrb[0].mxu0 %v635
        %v744 = vpop.f32.mrb[0].mxu0
        %v745 = vadd.f32 0.0, %v744
        %v746 = vpop.f32.mrb[0].mxu0
        %v747 = vpop.f32.mrb[0].mxu0
        %v748 = vadd.f32 0.0, %v747
        %v749 = vpop.f32.mrb[0].mxu0
        %750 = vmatprep.mubr.bf16.mxu0 0
        %751 = vmatmul.mubr.bf16.gmra.mrb[0].mxu0 %v636
        %v752 = vpop.f32.mrb[0].mxu0
        %v753 = vadd.f32 0.0, %v752
        %v754 = vpop.f32.mrb[0].mxu0
        %v755 = vpop.f32.mrb[0].mxu0
        %v756 = vadd.f32 0.0, %v755
        %v757 = vpop.f32.mrb[0].mxu0
        %758 = vmatprep.mubr.bf16.mxu0 0
        %759 = vmatmul.mubr.bf16.gmra.mrb[0].mxu0 %v637
        %v760 = vpop.f32.mrb[0].mxu0
        %v761 = vadd.f32 0.0, %v760
        %v762 = vpop.f32.mrb[0].mxu0
        %v763 = vpop.f32.mrb[0].mxu0
        %v764 = vadd.f32 0.0, %v763
        %v765 = vpop.f32.mrb[0].mxu0
        %766 = vdwg.mxu0
        %v767 = vpack.c.bf16 %v740, %v737
        %v768 = vpack.c.bf16 %v748, %v745
        %v769 = vpack.c.bf16 %v756, %v753
        %v770 = vpack.c.bf16 %v764, %v761
        %v775 = vunpack.c.l.b16 %v767
        %v776 = vunpack.c.h.b16 %v767
        %v777 = vunpack.c.l.b16 %v768
        %v778 = vunpack.c.h.b16 %v768
        %v779 = vunpack.c.l.b16 %v769
        %v780 = vunpack.c.h.b16 %v769
        %v781 = vunpack.c.l.b16 %v770
        %v782 = vunpack.c.h.b16 %v770
        %v783 = vpack.c.b16 %v775, %v775
        %v784 = vpack.c.b16 %v776, %v776
        %v785 = vpack.c.b16 %v777, %v777
        %v786 = vpack.c.b16 %v778, %v778
        %v787 = vpack.c.b16 %v779, %v779
        %v788 = vpack.c.b16 %v780, %v780
        %v789 = vpack.c.b16 %v781, %v781
        %v790 = vpack.c.b16 %v782, %v782
        %799 = vst [vmem:[%s271] sm:$0xf] %v783
        %800 = vst [vmem:[%s271 + $0x4] sm:$0xf] %v784
        %801 = vst [vmem:[%s271 + $0x8] sm:$0xf] %v785
        %802 = vst [vmem:[%s271 + $0xc] sm:$0xf] %v786
        %803 = vst [vmem:[%s271 + $0x10] sm:$0xf] %v787
        %804 = vst [vmem:[%s271 + $0x14] sm:$0xf] %v788
        %805 = vst [vmem:[%s271 + $0x18] sm:$0xf] %v789
        %806 = vst [vmem:[%s271 + $0x1c] sm:$0xf] %v790
      $region48: #{gnn_forward.2} parent=39 // pred_fallthru
        _
      %s807 = smul.u32 8, %s20
      %p808 = scmp.lt.s32.totalorder %s807, 15
      %s809 = scalar_select %p808, %s807, 15
      %s810 = smul.addr %s809, 4
      %s811 = scalar_lea.vmem %s5, %s810
      // Predicated region
      $region49: #{gnn_forward.2} parent=39 // pred_check
        %p812 = pneg %p163
      $region50: #{gnn_forward.2} parent=39 // pred_check_branch
        %814 = sbr.rel (%p812) target = $region52
      $region51: #{gnn_forward.2} parent=39 // pred_region
        %s815 = smul.u32 8, %s20
      $region52: #{gnn_forward.2} parent=39 // pred_fallthru
        _
    $region40: #{gnn_forward.2} parent=5 // pred_fallthru
      _
    %p816 = scmp.le.s32.totalorder 2, %s11
    // Predicated region
    $region53: #{gnn_forward.2} parent=5 // pred_check
      %p817 = pneg %p816
    $region54: #{gnn_forward.2} parent=5 // pred_check_branch
      %819 = sbr.rel (%p817) target = $region56
    $region55: #{gnn_forward.2} parent=5 // pred_region
      %s820 = ssub.s32 %s11, 2
      // Predicated region
      $region57: #{gnn_forward.2} parent=55 // pred_check
        %p821 = pneg %p169
      $region58: #{gnn_forward.2} parent=55 // pred_check_branch
        %823 = sbr.rel (%p821) target = $region60
      $region59: #{gnn_forward.2} parent=55 // pred_region
        %s824 = smul.u32 8, %s22
        %p825 = scmp.lt.s32.totalorder %s824, 15
        %s826 = scalar_select %p825, %s824, 15
        %s827 = smul.addr %s826, 4
        %s828 = scalar_lea.vmem %s5, %s827
      $region60: #{gnn_forward.2} parent=55 // pred_fallthru
        _
    $region56: #{gnn_forward.2} parent=5 // pred_fallthru
      _
  $region6: #{gnn_forward.2} parent=0 // loop_footer
    %s15 = sadd.s32 1, %s11
  $region7: #{gnn_forward.2} parent=0 // loop_footer_branch
    %10 = sbr.rel target = $region3
  $region8: #{gnn_forward.2} parent=0 // loop_exit
    _

</llo_original>
